<compile_context>
chip_gen: v5e
topology: v5e:2x2
jax: 0.10.0
libtpu: 0.0.40
codegen_flags: <defaults>
</compile_context>

<pallas_src>
import jax
import jax.numpy as jnp
from jax import lax
from jax.experimental import pallas as pl
from jax.experimental.pallas import tpu as pltpu

PAIR_EPS = 1e-6    # torch.pairwise_distance eps (added to the difference)
NORM_EPS = 1e-12   # torch.nn.functional.normalize eps


def _vlad_kernel(x_ref, c_ref, o_ref):
    # x_ref: (TN, D) batch of feature rows
    # c_ref: (K, D)  full centroid matrix (resident)
    # o_ref: (TN, K, D) output tile
    x = x_ref[...].astype(jnp.float32)                 # (TN, D)
    c = c_ref[...].astype(jnp.float32)                 # (K, D)
    D = x.shape[-1]

    # ---- residual tensor: formed once, reused for distance, norm and output ----
    resid = x[:, None, :] - c[None, :, :]              # (TN, K, D)
    sq = resid * resid                                 # (TN, K, D)
    rsq = jnp.sum(sq, axis=-1)                         # (TN, K)  ||x - c||^2
    rsum = jnp.sum(resid, axis=-1)                     # (TN, K)  sum_d (x - c)

    # torch.pairwise_distance adds eps to the difference:
    #   ||x - c + eps||^2 = ||x - c||^2 + 2*eps*sum(x - c) + D*eps^2
    dist2 = rsq + (2.0 * PAIR_EPS) * rsum + D * (PAIR_EPS * PAIR_EPS)

    # ---- soft-assignment: softmax over classes of 1/dist (rsqrt on the EUP) ----
    inv_dist = lax.rsqrt(jnp.maximum(dist2, 1e-30))    # (TN, K) = 1/dist
    m = jnp.max(inv_dist, axis=-1, keepdims=True)      # (TN, 1)
    e = jnp.exp(inv_dist - m)                          # (TN, K)
    denom = jnp.sum(e, axis=-1, keepdims=True)         # (TN, 1)
    assign = e * pl.reciprocal(denom, approx=True)     # (TN, K)

    # ---- fused intra-(over D) + global-(over K*D) L2 normalization ----
    #   ||v_c||^2 = assign_c^2 * ||x - c||^2        (no second big square/reduce)
    nd2 = (assign * assign) * rsq                      # (TN, K)
    r = lax.rsqrt(jnp.maximum(nd2, NORM_EPS * NORM_EPS))        # 1 / max(||v_c||, eps)
    # per-row global norm over the flattened (K*D):  ||vn||^2 = sum_c nd2_c * r_c^2
    tot2 = jnp.sum(nd2 * (r * r), axis=-1, keepdims=True)       # (TN, 1)
    inv_tot = lax.rsqrt(jnp.maximum(tot2, NORM_EPS * NORM_EPS)) # 1 / max(||vn||, eps)

    # ---- single broadcast multiply + one full-tile, lane-dense store ----
    scale = assign * r * inv_tot                       # (TN, K)
    o_ref[...] = (resid * scale[:, :, None]).astype(o_ref.dtype)


def vlad_forward(x, centroids, *, block_n=128):
    """x: (N, D) float32, centroids: (K, D) float32 -> (N, K*D) float32."""
    N, D = x.shape
    K, D2 = centroids.shape
    assert D == D2

    # Rows-per-step: full batch if it is small, otherwise a multiple of 8.
    if N <= block_n:
        tn = N                      # full-extent block is always a legal shape
    else:
        tn = block_n
        assert tn % 8 == 0, "block_n must be a multiple of 8"

    grid = (pl.cdiv(N, tn),)

    out = pl.pallas_call(
        _vlad_kernel,
        out_shape=jax.ShapeDtypeStruct((N, K, D), x.dtype),
        grid=grid,
        in_specs=[
            pl.BlockSpec((tn, D), lambda n: (n, 0)),    # TN feature rows per step
            pl.BlockSpec((K, D), lambda n: (0, 0)),     # full centroids, resident
        ],
        out_specs=pl.BlockSpec((tn, K, D), lambda n: (n, 0, 0)),
        compiler_params=pltpu.CompilerParams(dimension_semantics=("parallel",)),
    )(x, centroids)
    return out.reshape(N, K * D)


def vlad_reference(x, centroids):
    """Pure-JAX reference mirroring the PyTorch forward exactly."""
    N, D = x.shape
    K = centroids.shape[0]
    diff_eps = x[:, None, :] - centroids[None, :, :] + PAIR_EPS     # (N, K, D)
    dist = jnp.sqrt(jnp.sum(diff_eps * diff_eps, axis=-1))          # (N, K)
    assign = jax.nn.softmax(1.0 / dist, axis=1)                     # (N, K)
    resid = x[:, None, :] - centroids[None, :, :]                   # (N, K, D)
    v = assign[:, :, None] * resid                                  # (N, K, D)
    nd = jnp.sqrt(jnp.sum(v * v, axis=2, keepdims=True))
    vn = v / jnp.maximum(nd, NORM_EPS)
    flat = vn.reshape(N, K * D)
    tot = jnp.sqrt(jnp.sum(flat * flat, axis=1, keepdims=True))
    return flat / jnp.maximum(tot, NORM_EPS)


if __name__ == "__main__":
    # Small, module-consistent shapes: batch N=64, dim D=128, num_classes K=16.
    # block_n=16 -> grid of 4 steps, so a v7x chip can feed both TensorCores.
    N, D, K = 64, 128, 16
    key = jax.random.PRNGKey(0)
    kx, kc = jax.random.split(key)
    x = jax.random.uniform(kx, (N, D), dtype=jnp.float32)
    # centroids = torch.rand(num_classes, dim) equivalent (uniform [0, 1))
    centroids = jax.random.uniform(kc, (K, D), dtype=jnp.float32)

    out = vlad_forward(x, centroids, block_n=16)
    out = jax.block_until_ready(out)

    ref = vlad_reference(x, centroids)
    assert out.shape == (N, K * D)
    assert jnp.allclose(out, ref, atol=2e-5, rtol=2e-5), "mismatch vs reference"
    print("KERNEL_OK")
</pallas_src>

<mosaic_0001>
module attributes {stable_mosaic.version = 11 : i64} {
  func.func @_vlad_kernel(%arg0: i32, %arg1: memref<16x128xf32, #tpu.memory_space<vmem>>, %arg2: memref<16x128xf32, #tpu.memory_space<vmem>>, %arg3: memref<16x16x128xf32, #tpu.memory_space<vmem>>) attributes {dimension_semantics = [#tpu.dimension_semantics<parallel>], iteration_bounds = array<i64: 4>, scalar_prefetch = 0 : i64, scratch_operands = 0 : i64, tpu.core_type = #tpu.core_type<tc>, window_params = [{transform_indices = @transform_0, window_bounds = array<i64: 16, 128>}, {pipeline_mode = #tpu.pipeline_mode<synchronous>, transform_indices = @transform_1, window_bounds = array<i64: 16, 128>}, {transform_indices = @transform_2, window_bounds = array<i64: 16, 16, 128>}]} {
    %c0 = arith.constant 0 : index
    %c0_0 = arith.constant 0 : index
    %0 = vector.load %arg1[%c0, %c0_0] : memref<16x128xf32, #tpu.memory_space<vmem>>, vector<16x128xf32>
    %c0_1 = arith.constant 0 : index
    %c0_2 = arith.constant 0 : index
    %1 = vector.load %arg2[%c0_1, %c0_2] : memref<16x128xf32, #tpu.memory_space<vmem>>, vector<16x128xf32>
    %2 = vector.shape_cast %0 : vector<16x128xf32> to vector<16x1x128xf32>
    %3 = vector.shape_cast %1 : vector<16x128xf32> to vector<1x16x128xf32>
    %4 = vector.broadcast %2 : vector<16x1x128xf32> to vector<16x16x128xf32>
    %5 = vector.broadcast %3 : vector<1x16x128xf32> to vector<16x16x128xf32>
    %6 = arith.subf %4, %5 : vector<16x16x128xf32>
    %7 = arith.mulf %6, %6 : vector<16x16x128xf32>
    %cst = arith.constant dense<0.000000e+00> : vector<16x16xf32>
    %8 = vector.multi_reduction <add>, %7, %cst [2] : vector<16x16x128xf32> to vector<16x16xf32>
    %cst_3 = arith.constant dense<0.000000e+00> : vector<16x16xf32>
    %9 = vector.multi_reduction <add>, %6, %cst_3 [2] : vector<16x16x128xf32> to vector<16x16xf32>
    %cst_4 = arith.constant 2.000000e-06 : f32
    %10 = vector.broadcast %cst_4 : f32 to vector<16x16xf32>
    %11 = arith.mulf %10, %9 : vector<16x16xf32>
    %12 = arith.addf %8, %11 : vector<16x16xf32>
    %cst_5 = arith.constant 1.280000e-10 : f32
    %13 = vector.broadcast %cst_5 : f32 to vector<16x16xf32>
    %14 = arith.addf %12, %13 : vector<16x16xf32>
    %cst_6 = arith.constant 1.000000e-30 : f32
    %15 = vector.broadcast %cst_6 : f32 to vector<16x16xf32>
    %16 = arith.maximumf %14, %15 : vector<16x16xf32>
    %17 = math.rsqrt %16 : vector<16x16xf32>
    %cst_7 = arith.constant dense<0xFF800000> : vector<16xf32>
    %18 = vector.multi_reduction <maximumf>, %17, %cst_7 [1] : vector<16x16xf32> to vector<16xf32>
    %19 = vector.shape_cast %18 : vector<16xf32> to vector<16x1xf32>
    %20 = vector.broadcast %19 : vector<16x1xf32> to vector<16x16xf32>
    %21 = arith.subf %17, %20 : vector<16x16xf32>
    %22 = math.exp %21 : vector<16x16xf32>
    %cst_8 = arith.constant dense<0.000000e+00> : vector<16xf32>
    %23 = vector.multi_reduction <add>, %22, %cst_8 [1] : vector<16x16xf32> to vector<16xf32>
    %24 = vector.shape_cast %23 : vector<16xf32> to vector<16x1xf32>
    %25 = tpu.reciprocal %24 {approx = true} : vector<16x1xf32> -> vector<16x1xf32>
    %26 = vector.broadcast %25 : vector<16x1xf32> to vector<16x16xf32>
    %27 = arith.mulf %22, %26 : vector<16x16xf32>
    %28 = arith.mulf %27, %27 : vector<16x16xf32>
    %29 = arith.mulf %28, %8 : vector<16x16xf32>
    %cst_9 = arith.constant 1.000000e-24 : f32
    %30 = vector.broadcast %cst_9 : f32 to vector<16x16xf32>
    %31 = arith.maximumf %29, %30 : vector<16x16xf32>
    %32 = math.rsqrt %31 : vector<16x16xf32>
    %33 = arith.mulf %32, %32 : vector<16x16xf32>
    %34 = arith.mulf %29, %33 : vector<16x16xf32>
    %cst_10 = arith.constant dense<0.000000e+00> : vector<16xf32>
    %35 = vector.multi_reduction <add>, %34, %cst_10 [1] : vector<16x16xf32> to vector<16xf32>
    %36 = vector.shape_cast %35 : vector<16xf32> to vector<16x1xf32>
    %cst_11 = arith.constant 1.000000e-24 : f32
    %37 = vector.broadcast %cst_11 : f32 to vector<16x1xf32>
    %38 = arith.maximumf %36, %37 : vector<16x1xf32>
    %39 = math.rsqrt %38 : vector<16x1xf32>
    %40 = arith.mulf %27, %32 : vector<16x16xf32>
    %41 = vector.broadcast %39 : vector<16x1xf32> to vector<16x16xf32>
    %42 = arith.mulf %40, %41 : vector<16x16xf32>
    %43 = vector.shape_cast %42 : vector<16x16xf32> to vector<16x16x1xf32>
    %44 = vector.broadcast %43 : vector<16x16x1xf32> to vector<16x16x128xf32>
    %45 = arith.mulf %6, %44 : vector<16x16x128xf32>
    %c0_12 = arith.constant 0 : index
    %c0_13 = arith.constant 0 : index
    %c0_14 = arith.constant 0 : index
    %46 = vector.load %arg3[%c0_12, %c0_13, %c0_14] : memref<16x16x128xf32, #tpu.memory_space<vmem>>, vector<16x16x128xf32>
    tpu.vector_store %arg3[%c0_12, %c0_13, %c0_14], %45 {strides = array<i32>} : memref<16x16x128xf32, #tpu.memory_space<vmem>>, vector<16x16x128xf32>,
    return
  }
  func.func @transform_0(%arg0: i32) -> (i32, i32) {
    %c0_i32 = arith.constant 0 : i32
    %c0_i32_0 = arith.constant 0 : i32
    return %arg0, %c0_i32 : i32, i32
  }
  func.func @transform_1(%arg0: i32) -> (i32, i32) {
    %c0_i32 = arith.constant 0 : i32
    %c0_i32_0 = arith.constant 0 : i32
    %c0_i32_1 = arith.constant 0 : i32
    return %c0_i32, %c0_i32_0 : i32, i32
  }
  func.func @transform_2(%arg0: i32) -> (i32, i32, i32) {
    %c0_i32 = arith.constant 0 : i32
    %c0_i32_0 = arith.constant 0 : i32
    %c0_i32_1 = arith.constant 0 : i32
    return %arg0, %c0_i32, %c0_i32_0 : i32, i32, i32
  }
}

</mosaic_0001>

<llo_original>
// kernel: tpu_custom_call.1
$region0: #{tpu_custom_call.1}
  #allocation0 [shape = 'u32[]', space=smem, size = 0x4, offset = 0x4, fixed_abs, tag = 'smem constant byte address 0x4 - core index']
  #allocation1 [shape = 'u32[72,128]{1,0:T(1,128)}', space=vmem, size = 0x9000, scoped, tag = 'internal scratch']
  %s0 = inlined_call_operand.hbm [shape: f32[64,128], index: 0, kind: input, shape index: {}]
  %s1 = inlined_call_operand.hbm [shape: f32[16,128], index: 1, kind: input, shape index: {}]
  %s2 = inlined_call_operand.hbm [shape: f32[64,16,128], index: 2, kind: output, shape index: {}]
  %s3 = sld [smem:[#allocation0]]
  $region49: #{tpu_custom_call.1} parent=0
    _
  %s5 = ssub.s32 1, %s3
  %s6 = scalar_select 0, %s5, %s3
  $region1: #{tpu_custom_call.1} parent=0
    #allocation2 [shape = 'u8[16384]{0}', space=vmem, size = 0x4000, scoped, tag = 'input window, operand 0']
    #allocation3 [shape = 's32[2]{0}', space=sflag, size = 0x8, scoped, tag = 'scoped memory for tpu_custom_call.1']
    #allocation4 [shape = 's32[2]{0}', space=sflag, size = 0x8, scoped, tag = 'scoped memory for tpu_custom_call.1']
    #allocation5 [shape = 'u8[8192]{0}', space=vmem, size = 0x2000, scoped, tag = 'input window, operand 1, single buffered']
    #allocation6 [shape = 's32[1]{0}', space=sflag, size = 0x4, scoped, tag = 'scoped memory for tpu_custom_call.1']
    #allocation7 [shape = 'u8[262144]{0}', space=vmem, size = 0x40000, scoped, tag = 'output window, operand 0']
    %7 = vsyncpa [#allocation3], 0
    %s8 = scalar_lea.sflag [#allocation3], 1
    %9 = vsyncpa %s8, 0
    %10 = vsyncpa [#allocation6], 0
    %11 = vsyncpa [#allocation4], 0
    %s12 = scalar_lea.sflag [#allocation4], 1
    %13 = vsyncpa %s12, 0
    loop: start=0, step=1, limit=6
    $region2: #{tpu_custom_call.1} parent=1 // loop_pre_header
      _
    $region3: #{tpu_custom_call.1} parent=1 // loop_header
      %s15 = sphi 0, %s19
      %p16 = scmp.ge.s32.totalorder %s15, 6
      %s25 = sphi 0, %s27
      %s28 = sphi 0, %s25
      %s29 = sphi 0, %s28
      %s45 = sphi 0, %s29
      %s49 = sphi 0, %s49
      %s51 = sphi 0, %s49
      %s52 = sphi 0, %s51
      %s66 = sphi 0, %s52
      %s72 = sphi 0, %s74
      %s75 = sphi 0, %s72
      %s76 = sphi 0, %s75
      %s92 = sphi 0, %s76
    $region4: #{tpu_custom_call.1} parent=1 // loop_header_branch
      %18 = sbr.rel (%p16) target = $region8
    $region5: #{tpu_custom_call.1} parent=1 // loop_body
      %s20 = ssub.s32 %s15, 1
      %s21 = ssub.s32 %s15, 2
      %s22 = sadd.s32 %s15, 1
      %s23 = ssub.s32 %s15, %s22
      %p24 = scmp.eq.s32.totalorder %s23, 0
      %s26 = sadd.s32 %s25, 1
      %s27 = scalar_select %p24, %s25, %s26
      %p30 = pneg %p24
      %p31 = scmp.eq.s32.totalorder %s15, 3
      %p32 = por %p30, %p31
      %p33 = scmp.ne.s32.totalorder %s25, %s28
      %p34 = scmp.eq.s32.totalorder %s15, 0
      %p35 = por %p33, %p34
      %p36 = scmp.ne.s32.totalorder %s25, %s28
      %p37 = scmp.eq.s32.totalorder %s20, 3
      %p38 = por %p36, %p37
      %p39 = scmp.ne.s32.totalorder %s28, %s29
      %p40 = scmp.eq.s32.totalorder %s20, 0
      %p41 = por %p39, %p40
      %p42 = scmp.ne.s32.totalorder %s28, %s29
      %p43 = scmp.eq.s32.totalorder %s21, 3
      %p44 = por %p42, %p43
      %p46 = scmp.ne.s32.totalorder %s29, %s45
      %p47 = scmp.eq.s32.totalorder %s21, 0
      %p48 = por %p46, %p47
      %s50 = sadd.s32 %s49, 1
      %p53 = scmp.eq.s32.totalorder %s15, 3
      %p54 = scmp.ne.s32.totalorder %s49, %s51
      %p55 = scmp.eq.s32.totalorder %s15, 0
      %p56 = por %p54, %p55
      %p57 = scmp.ne.s32.totalorder %s49, %s51
      %p58 = scmp.eq.s32.totalorder %s20, 3
      %p59 = por %p57, %p58
      %p60 = scmp.ne.s32.totalorder %s51, %s52
      %p61 = scmp.eq.s32.totalorder %s20, 0
      %p62 = por %p60, %p61
      %p63 = scmp.ne.s32.totalorder %s51, %s52
      %p64 = scmp.eq.s32.totalorder %s21, 3
      %p65 = por %p63, %p64
      %p67 = scmp.ne.s32.totalorder %s52, %s66
      %p68 = scmp.eq.s32.totalorder %s21, 0
      %p69 = por %p67, %p68
      %s70 = ssub.s32 %s15, %s22
      %p71 = scmp.eq.s32.totalorder %s70, 0
      %s73 = sadd.s32 %s72, 1
      %s74 = scalar_select %p71, %s72, %s73
      %p77 = pneg %p71
      %p78 = scmp.eq.s32.totalorder %s15, 3
      %p79 = por %p77, %p78
      %p80 = scmp.ne.s32.totalorder %s72, %s75
      %p81 = scmp.eq.s32.totalorder %s15, 0
      %p82 = por %p80, %p81
      %p83 = scmp.ne.s32.totalorder %s72, %s75
      %p84 = scmp.eq.s32.totalorder %s20, 3
      %p85 = por %p83, %p84
      %p86 = scmp.ne.s32.totalorder %s75, %s76
      %p87 = scmp.eq.s32.totalorder %s20, 0
      %p88 = por %p86, %p87
      %p89 = scmp.ne.s32.totalorder %s75, %s76
      %p90 = scmp.eq.s32.totalorder %s21, 3
      %p91 = por %p89, %p90
      %p93 = scmp.ne.s32.totalorder %s76, %s92
      %p94 = scmp.eq.s32.totalorder %s21, 0
      %p95 = por %p93, %p94
      %p96 = scmp.le.s32.totalorder 1, %s15
      %p97 = scmp.lt.s32.totalorder %s15, 5
      %p98 = pnand %p96, %p97
      %p99 = pneg %p98
      // Predicated region
      $region9: #{tpu_custom_call.1} parent=5 // pred_check
        _
      $region10: #{tpu_custom_call.1} parent=5 // pred_check_branch
        %101 = sbr.rel (%p98) target = $region12
      $region11: #{tpu_custom_call.1} parent=5 // pred_region
        %s102 = ssub.s32 %s15, 1
        // Predicated region
        $region13: #{tpu_custom_call.1} parent=11 // pred_check
          %p103 = pneg %p62
        $region14: #{tpu_custom_call.1} parent=11 // pred_check_branch
          %105 = sbr.rel (%p103) target = $region16
        $region15: #{tpu_custom_call.1} parent=11 // pred_region
          %107 = vsyncadd [#allocation6], 0
          %s108 = sshll.u32 %s1, 4
          %s109 = int_to_ptr.hbm [resolvable:$true] %s108
          %s110 = sshll.u32 [#allocation5], 4
          %s111 = int_to_ptr.vmem [resolvable:$true] %s110
          %116 = dma.hbm_to_vmem [thread:$0]  %s109, 256, %s111, [#allocation6], 128, 128, 8
        $region16: #{tpu_custom_call.1} parent=11 // pred_fallthru
          _
      $region12: #{tpu_custom_call.1} parent=5 // pred_fallthru
        _
      %p117 = scmp.lt.s32.totalorder %s15, 4
      // Predicated region
      $region17: #{tpu_custom_call.1} parent=5 // pred_check
        %p118 = pneg %p117
      $region18: #{tpu_custom_call.1} parent=5 // pred_check_branch
        %120 = sbr.rel (%p118) target = $region20
      $region19: #{tpu_custom_call.1} parent=5 // pred_region
        // Predicated region
        $region21: #{tpu_custom_call.1} parent=19 // pred_check
          %p121 = pneg %p35
        $region22: #{tpu_custom_call.1} parent=19 // pred_check_branch
          %123 = sbr.rel (%p121) target = $region24
        $region23: #{tpu_custom_call.1} parent=19 // pred_region
          %s124 = sand.u32 %s25, 1
          %s125 = scalar_lea.sflag [#allocation3], %s124
          %s126 = sand.u32 %s25, 1
          %s127 = smul.addr %s126, 16
          %s128 = scalar_lea.vmem [#allocation2], %s127
          %s129 = smul.u32 2, %s15
          %131 = vsyncadd %s125, 0
          %s132 = smul.addr %s129, 8
          %s133 = scalar_lea.hbm %s0, %s132
          %s134 = sshll.u32 %s133, 4
          %s135 = int_to_ptr.hbm [resolvable:$true] %s134
          %s136 = sshll.u32 %s128, 4
          %s137 = int_to_ptr.vmem [resolvable:$true] %s136
          %142 = dma.hbm_to_vmem [thread:$0]  %s135, 256, %s137, %s125, 128, 128, 8
        $region24: #{tpu_custom_call.1} parent=19 // pred_fallthru
          _
      $region20: #{tpu_custom_call.1} parent=5 // pred_fallthru
        _
      %p143 = scmp.le.s32.totalorder 1, %s15
      %p144 = scmp.lt.s32.totalorder %s15, 5
      %p145 = pnand %p143, %p144
      %p146 = pneg %p145
      // Predicated region
      $region25: #{tpu_custom_call.1} parent=5 // pred_check
        _
      $region26: #{tpu_custom_call.1} parent=5 // pred_check_branch
        %148 = sbr.rel (%p145) target = $region28
      $region27: #{tpu_custom_call.1} parent=5 // pred_region
        %s149 = ssub.s32 %s15, 1
        %s150 = sand.u32 %s28, 1
        %s151 = scalar_lea.sflag [#allocation3], %s150
        %s152 = sand.u32 %s28, 1
        %s153 = smul.addr %s152, 16
        %s154 = scalar_lea.vmem [#allocation2], %s153
        // Predicated region
        $region29: #{tpu_custom_call.1} parent=27 // pred_check
          %p155 = pneg %p41
        $region30: #{tpu_custom_call.1} parent=27 // pred_check_branch
          %157 = sbr.rel (%p155) target = $region32
        $region31: #{tpu_custom_call.1} parent=27 // pred_region
          %159 = dma.done %s151, 256
        $region32: #{tpu_custom_call.1} parent=27 // pred_fallthru
          _
        // Predicated region
        $region33: #{tpu_custom_call.1} parent=27 // pred_check
          %p160 = pneg %p62
        $region34: #{tpu_custom_call.1} parent=27 // pred_check_branch
          %162 = sbr.rel (%p160) target = $region36
        $region35: #{tpu_custom_call.1} parent=27 // pred_region
          %164 = dma.done [#allocation6], 256
        $region36: #{tpu_custom_call.1} parent=27 // pred_fallthru
          _
        %s165 = sand.u32 %s28, 1
        %s166 = scalar_lea.sflag [#allocation3], %s165
        %s167 = sand.u32 %s28, 1
        %s168 = smul.addr %s167, 16
        %s169 = scalar_lea.vmem [#allocation2], %s168
        %p170 = pneg %p41
        %p171 = pneg %p38
        %p172 = pneg %p62
        %p173 = pneg %p59
        %p174 = pneg %p88
        %p175 = pneg %p85
        %s176 = sand.u32 %s75, 1
        %s177 = scalar_lea.sflag [#allocation4], %s176
        %s178 = sand.u32 %s75, 1
        %s179 = smul.addr %s178, 256
        %s180 = scalar_lea.vmem [#allocation7], %s179
        %s181 = smul.u32 2, %s20
        %s182 = smul.u32 16, %s20
        %v183 = vld [vmem:[%s154] sm:$0xff]
        %v184 = vld [vmem:[%s154 + $0x8] sm:$0xff]
        %v185 = vld [vmem:[#allocation5] sm:$0xff]
        %v186 = vld [vmem:[#allocation5 + $0x8] sm:$0xff]
        %v189 = vrot.slane %v183, 1
        %v190 = vrot.slane %v183, 2
        %v191 = vrot.slane %v183, 3
        %v192 = vrot.slane %v183, 4
        %v193 = vrot.slane %v183, 5
        %v194 = vrot.slane %v183, 6
        %v195 = vrot.slane %v183, 7
        %v196 = vrot.slane %v184, 1
        %v197 = vrot.slane %v184, 2
        %v198 = vrot.slane %v184, 3
        %v199 = vrot.slane %v184, 4
        %v200 = vrot.slane %v184, 5
        %v201 = vrot.slane %v184, 6
        %v202 = vrot.slane %v184, 7
        %v203 = vperm.slane %v183, 0
        %v204 = vperm.slane %v189, 0
        %v205 = vperm.slane %v190, 0
        %v206 = vperm.slane %v191, 0
        %v207 = vperm.slane %v192, 0
        %v208 = vperm.slane %v193, 0
        %v209 = vperm.slane %v194, 0
        %v210 = vperm.slane %v195, 0
        %v211 = vperm.slane %v184, 0
        %v212 = vperm.slane %v196, 0
        %v213 = vperm.slane %v197, 0
        %v214 = vperm.slane %v198, 0
        %v215 = vperm.slane %v199, 0
        %v216 = vperm.slane %v200, 0
        %v217 = vperm.slane %v201, 0
        %v218 = vperm.slane %v202, 0
        %v235 = vsub.f32 %v203, %v185
        %v236 = vsub.f32 %v203, %v186
        %v237 = vsub.f32 %v204, %v185
        %v238 = vsub.f32 %v204, %v186
        %v239 = vsub.f32 %v205, %v185
        %v240 = vsub.f32 %v205, %v186
        %v241 = vsub.f32 %v206, %v185
        %v242 = vsub.f32 %v206, %v186
        %v243 = vsub.f32 %v207, %v185
        %v244 = vsub.f32 %v207, %v186
        %v245 = vsub.f32 %v208, %v185
        %v246 = vsub.f32 %v208, %v186
        %v247 = vsub.f32 %v209, %v185
        %v248 = vsub.f32 %v209, %v186
        %v249 = vsub.f32 %v210, %v185
        %v250 = vsub.f32 %v210, %v186
        %v251 = vsub.f32 %v211, %v185
        %v252 = vsub.f32 %v211, %v186
        %v253 = vsub.f32 %v212, %v185
        %v254 = vsub.f32 %v212, %v186
        %v255 = vsub.f32 %v213, %v185
        %v256 = vsub.f32 %v213, %v186
        %v257 = vsub.f32 %v214, %v185
        %v258 = vsub.f32 %v214, %v186
        %v259 = vsub.f32 %v215, %v185
        %v260 = vsub.f32 %v215, %v186
        %v261 = vsub.f32 %v216, %v185
        %v262 = vsub.f32 %v216, %v186
        %v263 = vsub.f32 %v217, %v185
        %v264 = vsub.f32 %v217, %v186
        %v265 = vsub.f32 %v218, %v185
        %v266 = vsub.f32 %v218, %v186
        %v267 = vmul.f32 %v235, %v235
        %v268 = vmul.f32 %v236, %v236
        %v269 = vmul.f32 %v237, %v237
        %v270 = vmul.f32 %v238, %v238
        %v271 = vmul.f32 %v239, %v239
        %v272 = vmul.f32 %v240, %v240
        %v273 = vmul.f32 %v241, %v241
        %v274 = vmul.f32 %v242, %v242
        %v275 = vmul.f32 %v243, %v243
        %v276 = vmul.f32 %v244, %v244
        %v277 = vmul.f32 %v245, %v245
        %v278 = vmul.f32 %v246, %v246
        %v279 = vmul.f32 %v247, %v247
        %v280 = vmul.f32 %v248, %v248
        %v281 = vmul.f32 %v249, %v249
        %v282 = vmul.f32 %v250, %v250
        %v283 = vmul.f32 %v251, %v251
        %v284 = vmul.f32 %v252, %v252
        %v285 = vmul.f32 %v253, %v253
        %v286 = vmul.f32 %v254, %v254
        %v287 = vmul.f32 %v255, %v255
        %v288 = vmul.f32 %v256, %v256
        %v289 = vmul.f32 %v257, %v257
        %v290 = vmul.f32 %v258, %v258
        %v291 = vmul.f32 %v259, %v259
        %v292 = vmul.f32 %v260, %v260
        %v293 = vmul.f32 %v261, %v261
        %v294 = vmul.f32 %v262, %v262
        %v295 = vmul.f32 %v263, %v263
        %v296 = vmul.f32 %v264, %v264
        %v297 = vmul.f32 %v265, %v265
        %v298 = vmul.f32 %v266, %v266
        %299 = vadd.xlane.f32.xlu0 %v267
        %v300 = vpop.xlane.xlu0 %299
        %301 = vadd.xlane.f32.xlu0 %v268
        %v302 = vpop.xlane.xlu0 %301
        %303 = vadd.xlane.f32.xlu0 %v269
        %v304 = vpop.xlane.xlu0 %303
        %305 = vadd.xlane.f32.xlu0 %v270
        %v306 = vpop.xlane.xlu0 %305
        %307 = vadd.xlane.f32.xlu0 %v271
        %v308 = vpop.xlane.xlu0 %307
        %309 = vadd.xlane.f32.xlu0 %v272
        %v310 = vpop.xlane.xlu0 %309
        %311 = vadd.xlane.f32.xlu0 %v273
        %v312 = vpop.xlane.xlu0 %311
        %313 = vadd.xlane.f32.xlu0 %v274
        %v314 = vpop.xlane.xlu0 %313
        %315 = vadd.xlane.f32.xlu0 %v275
        %v316 = vpop.xlane.xlu0 %315
        %317 = vadd.xlane.f32.xlu0 %v276
        %v318 = vpop.xlane.xlu0 %317
        %319 = vadd.xlane.f32.xlu0 %v277
        %v320 = vpop.xlane.xlu0 %319
        %321 = vadd.xlane.f32.xlu0 %v278
        %v322 = vpop.xlane.xlu0 %321
        %323 = vadd.xlane.f32.xlu0 %v279
        %v324 = vpop.xlane.xlu0 %323
        %325 = vadd.xlane.f32.xlu0 %v280
        %v326 = vpop.xlane.xlu0 %325
        %327 = vadd.xlane.f32.xlu0 %v281
        %v328 = vpop.xlane.xlu0 %327
        %329 = vadd.xlane.f32.xlu0 %v282
        %v330 = vpop.xlane.xlu0 %329
        %331 = vadd.xlane.f32.xlu0 %v283
        %v332 = vpop.xlane.xlu0 %331
        %333 = vadd.xlane.f32.xlu0 %v284
        %v334 = vpop.xlane.xlu0 %333
        %335 = vadd.xlane.f32.xlu0 %v285
        %v336 = vpop.xlane.xlu0 %335
        %337 = vadd.xlane.f32.xlu0 %v286
        %v338 = vpop.xlane.xlu0 %337
        %339 = vadd.xlane.f32.xlu0 %v287
        %v340 = vpop.xlane.xlu0 %339
        %341 = vadd.xlane.f32.xlu0 %v288
        %v342 = vpop.xlane.xlu0 %341
        %343 = vadd.xlane.f32.xlu0 %v289
        %v344 = vpop.xlane.xlu0 %343
        %345 = vadd.xlane.f32.xlu0 %v290
        %v346 = vpop.xlane.xlu0 %345
        %347 = vadd.xlane.f32.xlu0 %v291
        %v348 = vpop.xlane.xlu0 %347
        %349 = vadd.xlane.f32.xlu0 %v292
        %v350 = vpop.xlane.xlu0 %349
        %351 = vadd.xlane.f32.xlu0 %v293
        %v352 = vpop.xlane.xlu0 %351
        %353 = vadd.xlane.f32.xlu0 %v294
        %v354 = vpop.xlane.xlu0 %353
        %355 = vadd.xlane.f32.xlu0 %v295
        %v356 = vpop.xlane.xlu0 %355
        %357 = vadd.xlane.f32.xlu0 %v296
        %v358 = vpop.xlane.xlu0 %357
        %359 = vadd.xlane.f32.xlu0 %v297
        %v360 = vpop.xlane.xlu0 %359
        %361 = vadd.xlane.f32.xlu0 %v298
        %v362 = vpop.xlane.xlu0 %361
        %363 = vadd.xlane.f32.xlu0 %v235
        %v364 = vpop.xlane.xlu0 %363
        %365 = vadd.xlane.f32.xlu0 %v236
        %v366 = vpop.xlane.xlu0 %365
        %367 = vadd.xlane.f32.xlu0 %v237
        %v368 = vpop.xlane.xlu0 %367
        %369 = vadd.xlane.f32.xlu0 %v238
        %v370 = vpop.xlane.xlu0 %369
        %371 = vadd.xlane.f32.xlu0 %v239
        %v372 = vpop.xlane.xlu0 %371
        %373 = vadd.xlane.f32.xlu0 %v240
        %v374 = vpop.xlane.xlu0 %373
        %375 = vadd.xlane.f32.xlu0 %v241
        %v376 = vpop.xlane.xlu0 %375
        %377 = vadd.xlane.f32.xlu0 %v242
        %v378 = vpop.xlane.xlu0 %377
        %379 = vadd.xlane.f32.xlu0 %v243
        %v380 = vpop.xlane.xlu0 %379
        %381 = vadd.xlane.f32.xlu0 %v244
        %v382 = vpop.xlane.xlu0 %381
        %383 = vadd.xlane.f32.xlu0 %v245
        %v384 = vpop.xlane.xlu0 %383
        %385 = vadd.xlane.f32.xlu0 %v246
        %v386 = vpop.xlane.xlu0 %385
        %387 = vadd.xlane.f32.xlu0 %v247
        %v388 = vpop.xlane.xlu0 %387
        %389 = vadd.xlane.f32.xlu0 %v248
        %v390 = vpop.xlane.xlu0 %389
        %391 = vadd.xlane.f32.xlu0 %v249
        %v392 = vpop.xlane.xlu0 %391
        %393 = vadd.xlane.f32.xlu0 %v250
        %v394 = vpop.xlane.xlu0 %393
        %395 = vadd.xlane.f32.xlu0 %v251
        %v396 = vpop.xlane.xlu0 %395
        %397 = vadd.xlane.f32.xlu0 %v252
        %v398 = vpop.xlane.xlu0 %397
        %399 = vadd.xlane.f32.xlu0 %v253
        %v400 = vpop.xlane.xlu0 %399
        %401 = vadd.xlane.f32.xlu0 %v254
        %v402 = vpop.xlane.xlu0 %401
        %403 = vadd.xlane.f32.xlu0 %v255
        %v404 = vpop.xlane.xlu0 %403
        %405 = vadd.xlane.f32.xlu0 %v256
        %v406 = vpop.xlane.xlu0 %405
        %407 = vadd.xlane.f32.xlu0 %v257
        %v408 = vpop.xlane.xlu0 %407
        %409 = vadd.xlane.f32.xlu0 %v258
        %v410 = vpop.xlane.xlu0 %409
        %411 = vadd.xlane.f32.xlu0 %v259
        %v412 = vpop.xlane.xlu0 %411
        %413 = vadd.xlane.f32.xlu0 %v260
        %v414 = vpop.xlane.xlu0 %413
        %415 = vadd.xlane.f32.xlu0 %v261
        %v416 = vpop.xlane.xlu0 %415
        %417 = vadd.xlane.f32.xlu0 %v262
        %v418 = vpop.xlane.xlu0 %417
        %419 = vadd.xlane.f32.xlu0 %v263
        %v420 = vpop.xlane.xlu0 %419
        %421 = vadd.xlane.f32.xlu0 %v264
        %v422 = vpop.xlane.xlu0 %421
        %423 = vadd.xlane.f32.xlu0 %v265
        %v424 = vpop.xlane.xlu0 %423
        %425 = vadd.xlane.f32.xlu0 %v266
        %v426 = vpop.xlane.xlu0 %425
        %v427 = vmul.f32 %v364, 2e-06
        %v428 = vmul.f32 %v366, 2e-06
        %v429 = vmul.f32 %v368, 2e-06
        %v430 = vmul.f32 %v370, 2e-06
        %v431 = vmul.f32 %v372, 2e-06
        %v432 = vmul.f32 %v374, 2e-06
        %v433 = vmul.f32 %v376, 2e-06
        %v434 = vmul.f32 %v378, 2e-06
        %v435 = vmul.f32 %v380, 2e-06
        %v436 = vmul.f32 %v382, 2e-06
        %v437 = vmul.f32 %v384, 2e-06
        %v438 = vmul.f32 %v386, 2e-06
        %v439 = vmul.f32 %v388, 2e-06
        %v440 = vmul.f32 %v390, 2e-06
        %v441 = vmul.f32 %v392, 2e-06
        %v442 = vmul.f32 %v394, 2e-06
        %v443 = vmul.f32 %v396, 2e-06
        %v444 = vmul.f32 %v398, 2e-06
        %v445 = vmul.f32 %v400, 2e-06
        %v446 = vmul.f32 %v402, 2e-06
        %v447 = vmul.f32 %v404, 2e-06
        %v448 = vmul.f32 %v406, 2e-06
        %v449 = vmul.f32 %v408, 2e-06
        %v450 = vmul.f32 %v410, 2e-06
        %v451 = vmul.f32 %v412, 2e-06
        %v452 = vmul.f32 %v414, 2e-06
        %v453 = vmul.f32 %v416, 2e-06
        %v454 = vmul.f32 %v418, 2e-06
        %v455 = vmul.f32 %v420, 2e-06
        %v456 = vmul.f32 %v422, 2e-06
        %v457 = vmul.f32 %v424, 2e-06
        %v458 = vmul.f32 %v426, 2e-06
        %v459 = vadd.f32 %v300, %v427
        %v460 = vadd.f32 %v302, %v428
        %v461 = vadd.f32 %v304, %v429
        %v462 = vadd.f32 %v306, %v430
        %v463 = vadd.f32 %v308, %v431
        %v464 = vadd.f32 %v310, %v432
        %v465 = vadd.f32 %v312, %v433
        %v466 = vadd.f32 %v314, %v434
        %v467 = vadd.f32 %v316, %v435
        %v468 = vadd.f32 %v318, %v436
        %v469 = vadd.f32 %v320, %v437
        %v470 = vadd.f32 %v322, %v438
        %v471 = vadd.f32 %v324, %v439
        %v472 = vadd.f32 %v326, %v440
        %v473 = vadd.f32 %v328, %v441
        %v474 = vadd.f32 %v330, %v442
        %v475 = vadd.f32 %v332, %v443
        %v476 = vadd.f32 %v334, %v444
        %v477 = vadd.f32 %v336, %v445
        %v478 = vadd.f32 %v338, %v446
        %v479 = vadd.f32 %v340, %v447
        %v480 = vadd.f32 %v342, %v448
        %v481 = vadd.f32 %v344, %v449
        %v482 = vadd.f32 %v346, %v450
        %v483 = vadd.f32 %v348, %v451
        %v484 = vadd.f32 %v350, %v452
        %v485 = vadd.f32 %v352, %v453
        %v486 = vadd.f32 %v354, %v454
        %v487 = vadd.f32 %v356, %v455
        %v488 = vadd.f32 %v358, %v456
        %v489 = vadd.f32 %v360, %v457
        %v490 = vadd.f32 %v362, %v458
        %v491 = vadd.f32 %v459, 1.28e-10
        %v492 = vadd.f32 %v460, 1.28e-10
        %v493 = vadd.f32 %v461, 1.28e-10
        %v494 = vadd.f32 %v462, 1.28e-10
        %v495 = vadd.f32 %v463, 1.28e-10
        %v496 = vadd.f32 %v464, 1.28e-10
        %v497 = vadd.f32 %v465, 1.28e-10
        %v498 = vadd.f32 %v466, 1.28e-10
        %v499 = vadd.f32 %v467, 1.28e-10
        %v500 = vadd.f32 %v468, 1.28e-10
        %v501 = vadd.f32 %v469, 1.28e-10
        %v502 = vadd.f32 %v470, 1.28e-10
        %v503 = vadd.f32 %v471, 1.28e-10
        %v504 = vadd.f32 %v472, 1.28e-10
        %v505 = vadd.f32 %v473, 1.28e-10
        %v506 = vadd.f32 %v474, 1.28e-10
        %v507 = vadd.f32 %v475, 1.28e-10
        %v508 = vadd.f32 %v476, 1.28e-10
        %v509 = vadd.f32 %v477, 1.28e-10
        %v510 = vadd.f32 %v478, 1.28e-10
        %v511 = vadd.f32 %v479, 1.28e-10
        %v512 = vadd.f32 %v480, 1.28e-10
        %v513 = vadd.f32 %v481, 1.28e-10
        %v514 = vadd.f32 %v482, 1.28e-10
        %v515 = vadd.f32 %v483, 1.28e-10
        %v516 = vadd.f32 %v484, 1.28e-10
        %v517 = vadd.f32 %v485, 1.28e-10
        %v518 = vadd.f32 %v486, 1.28e-10
        %v519 = vadd.f32 %v487, 1.28e-10
        %v520 = vadd.f32 %v488, 1.28e-10
        %v521 = vadd.f32 %v489, 1.28e-10
        %v522 = vadd.f32 %v490, 1.28e-10
        %v523 = vmax.f32 %v491, 1e-30
        %v524 = vmax.f32 %v492, 1e-30
        %v525 = vmax.f32 %v493, 1e-30
        %v526 = vmax.f32 %v494, 1e-30
        %v527 = vmax.f32 %v495, 1e-30
        %v528 = vmax.f32 %v496, 1e-30
        %v529 = vmax.f32 %v497, 1e-30
        %v530 = vmax.f32 %v498, 1e-30
        %v531 = vmax.f32 %v499, 1e-30
        %v532 = vmax.f32 %v500, 1e-30
        %v533 = vmax.f32 %v501, 1e-30
        %v534 = vmax.f32 %v502, 1e-30
        %v535 = vmax.f32 %v503, 1e-30
        %v536 = vmax.f32 %v504, 1e-30
        %v537 = vmax.f32 %v505, 1e-30
        %v538 = vmax.f32 %v506, 1e-30
        %v539 = vmax.f32 %v507, 1e-30
        %v540 = vmax.f32 %v508, 1e-30
        %v541 = vmax.f32 %v509, 1e-30
        %v542 = vmax.f32 %v510, 1e-30
        %v543 = vmax.f32 %v511, 1e-30
        %v544 = vmax.f32 %v512, 1e-30
        %v545 = vmax.f32 %v513, 1e-30
        %v546 = vmax.f32 %v514, 1e-30
        %v547 = vmax.f32 %v515, 1e-30
        %v548 = vmax.f32 %v516, 1e-30
        %v549 = vmax.f32 %v517, 1e-30
        %v550 = vmax.f32 %v518, 1e-30
        %v551 = vmax.f32 %v519, 1e-30
        %v552 = vmax.f32 %v520, 1e-30
        %v553 = vmax.f32 %v521, 1e-30
        %v554 = vmax.f32 %v522, 1e-30
        %v555 = vrsqrt.pop %v523
        %v556 = vmul.f32 %v555, %v523
        %v557 = vmul.f32 %v556, %v555
        %v558 = vmul.f32 0.5, %v557
        %v559 = vsub.f32 1.5, %v558
        %v560 = vmul.f32 %v555, %v559
        %vm561 = vweird.f32 %v523
        %vm562 = vweird.f32 %v555
        %vm563 = vmor %vm561, %vm562
        %v564 = vsel %vm563, %v555, %v560
        %v565 = vrsqrt.pop %v524
        %v566 = vmul.f32 %v565, %v524
        %v567 = vmul.f32 %v566, %v565
        %v568 = vmul.f32 0.5, %v567
        %v569 = vsub.f32 1.5, %v568
        %v570 = vmul.f32 %v565, %v569
        %vm571 = vweird.f32 %v524
        %vm572 = vweird.f32 %v565
        %vm573 = vmor %vm571, %vm572
        %v574 = vsel %vm573, %v565, %v570
        %v575 = vrsqrt.pop %v525
        %v576 = vmul.f32 %v575, %v525
        %v577 = vmul.f32 %v576, %v575
        %v578 = vmul.f32 0.5, %v577
        %v579 = vsub.f32 1.5, %v578
        %v580 = vmul.f32 %v575, %v579
        %vm581 = vweird.f32 %v525
        %vm582 = vweird.f32 %v575
        %vm583 = vmor %vm581, %vm582
        %v584 = vsel %vm583, %v575, %v580
        %v585 = vrsqrt.pop %v526
        %v586 = vmul.f32 %v585, %v526
        %v587 = vmul.f32 %v586, %v585
        %v588 = vmul.f32 0.5, %v587
        %v589 = vsub.f32 1.5, %v588
        %v590 = vmul.f32 %v585, %v589
        %vm591 = vweird.f32 %v526
        %vm592 = vweird.f32 %v585
        %vm593 = vmor %vm591, %vm592
        %v594 = vsel %vm593, %v585, %v590
        %v595 = vrsqrt.pop %v527
        %v596 = vmul.f32 %v595, %v527
        %v597 = vmul.f32 %v596, %v595
        %v598 = vmul.f32 0.5, %v597
        %v599 = vsub.f32 1.5, %v598
        %v600 = vmul.f32 %v595, %v599
        %vm601 = vweird.f32 %v527
        %vm602 = vweird.f32 %v595
        %vm603 = vmor %vm601, %vm602
        %v604 = vsel %vm603, %v595, %v600
        %v605 = vrsqrt.pop %v528
        %v606 = vmul.f32 %v605, %v528
        %v607 = vmul.f32 %v606, %v605
        %v608 = vmul.f32 0.5, %v607
        %v609 = vsub.f32 1.5, %v608
        %v610 = vmul.f32 %v605, %v609
        %vm611 = vweird.f32 %v528
        %vm612 = vweird.f32 %v605
        %vm613 = vmor %vm611, %vm612
        %v614 = vsel %vm613, %v605, %v610
        %v615 = vrsqrt.pop %v529
        %v616 = vmul.f32 %v615, %v529
        %v617 = vmul.f32 %v616, %v615
        %v618 = vmul.f32 0.5, %v617
        %v619 = vsub.f32 1.5, %v618
        %v620 = vmul.f32 %v615, %v619
        %vm621 = vweird.f32 %v529
        %vm622 = vweird.f32 %v615
        %vm623 = vmor %vm621, %vm622
        %v624 = vsel %vm623, %v615, %v620
        %v625 = vrsqrt.pop %v530
        %v626 = vmul.f32 %v625, %v530
        %v627 = vmul.f32 %v626, %v625
        %v628 = vmul.f32 0.5, %v627
        %v629 = vsub.f32 1.5, %v628
        %v630 = vmul.f32 %v625, %v629
        %vm631 = vweird.f32 %v530
        %vm632 = vweird.f32 %v625
        %vm633 = vmor %vm631, %vm632
        %v634 = vsel %vm633, %v625, %v630
        %v635 = vrsqrt.pop %v531
        %v636 = vmul.f32 %v635, %v531
        %v637 = vmul.f32 %v636, %v635
        %v638 = vmul.f32 0.5, %v637
        %v639 = vsub.f32 1.5, %v638
        %v640 = vmul.f32 %v635, %v639
        %vm641 = vweird.f32 %v531
        %vm642 = vweird.f32 %v635
        %vm643 = vmor %vm641, %vm642
        %v644 = vsel %vm643, %v635, %v640
        %v645 = vrsqrt.pop %v532
        %v646 = vmul.f32 %v645, %v532
        %v647 = vmul.f32 %v646, %v645
        %v648 = vmul.f32 0.5, %v647
        %v649 = vsub.f32 1.5, %v648
        %v650 = vmul.f32 %v645, %v649
        %vm651 = vweird.f32 %v532
        %vm652 = vweird.f32 %v645
        %vm653 = vmor %vm651, %vm652
        %v654 = vsel %vm653, %v645, %v650
        %v655 = vrsqrt.pop %v533
        %v656 = vmul.f32 %v655, %v533
        %v657 = vmul.f32 %v656, %v655
        %v658 = vmul.f32 0.5, %v657
        %v659 = vsub.f32 1.5, %v658
        %v660 = vmul.f32 %v655, %v659
        %vm661 = vweird.f32 %v533
        %vm662 = vweird.f32 %v655
        %vm663 = vmor %vm661, %vm662
        %v664 = vsel %vm663, %v655, %v660
        %v665 = vrsqrt.pop %v534
        %v666 = vmul.f32 %v665, %v534
        %v667 = vmul.f32 %v666, %v665
        %v668 = vmul.f32 0.5, %v667
        %v669 = vsub.f32 1.5, %v668
        %v670 = vmul.f32 %v665, %v669
        %vm671 = vweird.f32 %v534
        %vm672 = vweird.f32 %v665
        %vm673 = vmor %vm671, %vm672
        %v674 = vsel %vm673, %v665, %v670
        %v675 = vrsqrt.pop %v535
        %v676 = vmul.f32 %v675, %v535
        %v677 = vmul.f32 %v676, %v675
        %v678 = vmul.f32 0.5, %v677
        %v679 = vsub.f32 1.5, %v678
        %v680 = vmul.f32 %v675, %v679
        %vm681 = vweird.f32 %v535
        %vm682 = vweird.f32 %v675
        %vm683 = vmor %vm681, %vm682
        %v684 = vsel %vm683, %v675, %v680
        %v685 = vrsqrt.pop %v536
        %v686 = vmul.f32 %v685, %v536
        %v687 = vmul.f32 %v686, %v685
        %v688 = vmul.f32 0.5, %v687
        %v689 = vsub.f32 1.5, %v688
        %v690 = vmul.f32 %v685, %v689
        %vm691 = vweird.f32 %v536
        %vm692 = vweird.f32 %v685
        %vm693 = vmor %vm691, %vm692
        %v694 = vsel %vm693, %v685, %v690
        %v695 = vrsqrt.pop %v537
        %v696 = vmul.f32 %v695, %v537
        %v697 = vmul.f32 %v696, %v695
        %v698 = vmul.f32 0.5, %v697
        %v699 = vsub.f32 1.5, %v698
        %v700 = vmul.f32 %v695, %v699
        %vm701 = vweird.f32 %v537
        %vm702 = vweird.f32 %v695
        %vm703 = vmor %vm701, %vm702
        %v704 = vsel %vm703, %v695, %v700
        %v705 = vrsqrt.pop %v538
        %v706 = vmul.f32 %v705, %v538
        %v707 = vmul.f32 %v706, %v705
        %v708 = vmul.f32 0.5, %v707
        %v709 = vsub.f32 1.5, %v708
        %v710 = vmul.f32 %v705, %v709
        %vm711 = vweird.f32 %v538
        %vm712 = vweird.f32 %v705
        %vm713 = vmor %vm711, %vm712
        %v714 = vsel %vm713, %v705, %v710
        %v715 = vrsqrt.pop %v539
        %v716 = vmul.f32 %v715, %v539
        %v717 = vmul.f32 %v716, %v715
        %v718 = vmul.f32 0.5, %v717
        %v719 = vsub.f32 1.5, %v718
        %v720 = vmul.f32 %v715, %v719
        %vm721 = vweird.f32 %v539
        %vm722 = vweird.f32 %v715
        %vm723 = vmor %vm721, %vm722
        %v724 = vsel %vm723, %v715, %v720
        %v725 = vrsqrt.pop %v540
        %v726 = vmul.f32 %v725, %v540
        %v727 = vmul.f32 %v726, %v725
        %v728 = vmul.f32 0.5, %v727
        %v729 = vsub.f32 1.5, %v728
        %v730 = vmul.f32 %v725, %v729
        %vm731 = vweird.f32 %v540
        %vm732 = vweird.f32 %v725
        %vm733 = vmor %vm731, %vm732
        %v734 = vsel %vm733, %v725, %v730
        %v735 = vrsqrt.pop %v541
        %v736 = vmul.f32 %v735, %v541
        %v737 = vmul.f32 %v736, %v735
        %v738 = vmul.f32 0.5, %v737
        %v739 = vsub.f32 1.5, %v738
        %v740 = vmul.f32 %v735, %v739
        %vm741 = vweird.f32 %v541
        %vm742 = vweird.f32 %v735
        %vm743 = vmor %vm741, %vm742
        %v744 = vsel %vm743, %v735, %v740
        %v745 = vrsqrt.pop %v542
        %v746 = vmul.f32 %v745, %v542
        %v747 = vmul.f32 %v746, %v745
        %v748 = vmul.f32 0.5, %v747
        %v749 = vsub.f32 1.5, %v748
        %v750 = vmul.f32 %v745, %v749
        %vm751 = vweird.f32 %v542
        %vm752 = vweird.f32 %v745
        %vm753 = vmor %vm751, %vm752
        %v754 = vsel %vm753, %v745, %v750
        %v755 = vrsqrt.pop %v543
        %v756 = vmul.f32 %v755, %v543
        %v757 = vmul.f32 %v756, %v755
        %v758 = vmul.f32 0.5, %v757
        %v759 = vsub.f32 1.5, %v758
        %v760 = vmul.f32 %v755, %v759
        %vm761 = vweird.f32 %v543
        %vm762 = vweird.f32 %v755
        %vm763 = vmor %vm761, %vm762
        %v764 = vsel %vm763, %v755, %v760
        %v765 = vrsqrt.pop %v544
        %v766 = vmul.f32 %v765, %v544
        %v767 = vmul.f32 %v766, %v765
        %v768 = vmul.f32 0.5, %v767
        %v769 = vsub.f32 1.5, %v768
        %v770 = vmul.f32 %v765, %v769
        %vm771 = vweird.f32 %v544
        %vm772 = vweird.f32 %v765
        %vm773 = vmor %vm771, %vm772
        %v774 = vsel %vm773, %v765, %v770
        %v775 = vrsqrt.pop %v545
        %v776 = vmul.f32 %v775, %v545
        %v777 = vmul.f32 %v776, %v775
        %v778 = vmul.f32 0.5, %v777
        %v779 = vsub.f32 1.5, %v778
        %v780 = vmul.f32 %v775, %v779
        %vm781 = vweird.f32 %v545
        %vm782 = vweird.f32 %v775
        %vm783 = vmor %vm781, %vm782
        %v784 = vsel %vm783, %v775, %v780
        %v785 = vrsqrt.pop %v546
        %v786 = vmul.f32 %v785, %v546
        %v787 = vmul.f32 %v786, %v785
        %v788 = vmul.f32 0.5, %v787
        %v789 = vsub.f32 1.5, %v788
        %v790 = vmul.f32 %v785, %v789
        %vm791 = vweird.f32 %v546
        %vm792 = vweird.f32 %v785
        %vm793 = vmor %vm791, %vm792
        %v794 = vsel %vm793, %v785, %v790
        %v795 = vrsqrt.pop %v547
        %v796 = vmul.f32 %v795, %v547
        %v797 = vmul.f32 %v796, %v795
        %v798 = vmul.f32 0.5, %v797
        %v799 = vsub.f32 1.5, %v798
        %v800 = vmul.f32 %v795, %v799
        %vm801 = vweird.f32 %v547
        %vm802 = vweird.f32 %v795
        %vm803 = vmor %vm801, %vm802
        %v804 = vsel %vm803, %v795, %v800
        %v805 = vrsqrt.pop %v548
        %v806 = vmul.f32 %v805, %v548
        %v807 = vmul.f32 %v806, %v805
        %v808 = vmul.f32 0.5, %v807
        %v809 = vsub.f32 1.5, %v808
        %v810 = vmul.f32 %v805, %v809
        %vm811 = vweird.f32 %v548
        %vm812 = vweird.f32 %v805
        %vm813 = vmor %vm811, %vm812
        %v814 = vsel %vm813, %v805, %v810
        %v815 = vrsqrt.pop %v549
        %v816 = vmul.f32 %v815, %v549
        %v817 = vmul.f32 %v816, %v815
        %v818 = vmul.f32 0.5, %v817
        %v819 = vsub.f32 1.5, %v818
        %v820 = vmul.f32 %v815, %v819
        %vm821 = vweird.f32 %v549
        %vm822 = vweird.f32 %v815
        %vm823 = vmor %vm821, %vm822
        %v824 = vsel %vm823, %v815, %v820
        %v825 = vrsqrt.pop %v550
        %v826 = vmul.f32 %v825, %v550
        %v827 = vmul.f32 %v826, %v825
        %v828 = vmul.f32 0.5, %v827
        %v829 = vsub.f32 1.5, %v828
        %v830 = vmul.f32 %v825, %v829
        %vm831 = vweird.f32 %v550
        %vm832 = vweird.f32 %v825
        %vm833 = vmor %vm831, %vm832
        %v834 = vsel %vm833, %v825, %v830
        %v835 = vrsqrt.pop %v551
        %v836 = vmul.f32 %v835, %v551
        %v837 = vmul.f32 %v836, %v835
        %v838 = vmul.f32 0.5, %v837
        %v839 = vsub.f32 1.5, %v838
        %v840 = vmul.f32 %v835, %v839
        %vm841 = vweird.f32 %v551
        %vm842 = vweird.f32 %v835
        %vm843 = vmor %vm841, %vm842
        %v844 = vsel %vm843, %v835, %v840
        %v845 = vrsqrt.pop %v552
        %v846 = vmul.f32 %v845, %v552
        %v847 = vmul.f32 %v846, %v845
        %v848 = vmul.f32 0.5, %v847
        %v849 = vsub.f32 1.5, %v848
        %v850 = vmul.f32 %v845, %v849
        %vm851 = vweird.f32 %v552
        %vm852 = vweird.f32 %v845
        %vm853 = vmor %vm851, %vm852
        %v854 = vsel %vm853, %v845, %v850
        %v855 = vrsqrt.pop %v553
        %v856 = vmul.f32 %v855, %v553
        %v857 = vmul.f32 %v856, %v855
        %v858 = vmul.f32 0.5, %v857
        %v859 = vsub.f32 1.5, %v858
        %v860 = vmul.f32 %v855, %v859
        %vm861 = vweird.f32 %v553
        %vm862 = vweird.f32 %v855
        %vm863 = vmor %vm861, %vm862
        %v864 = vsel %vm863, %v855, %v860
        %v865 = vrsqrt.pop %v554
        %v866 = vmul.f32 %v865, %v554
        %v867 = vmul.f32 %v866, %v865
        %v868 = vmul.f32 0.5, %v867
        %v869 = vsub.f32 1.5, %v868
        %v870 = vmul.f32 %v865, %v869
        %vm871 = vweird.f32 %v554
        %vm872 = vweird.f32 %v865
        %vm873 = vmor %vm871, %vm872
        %v874 = vsel %vm873, %v865, %v870
        %v907 = vlaneseq
        %v908 = vand.u32 %v907, 127
        %v909 = vperm.slane %v564, %v908
        %v910 = vadd.s32 %v908, 4294967288
        %v911 = vperm.slane %v574, %v910
        %vm912 = vcmask 130112
        %v913 = vsel %vm912, %v911, %v909
        %v914 = vperm.slane %v584, %v908
        %v915 = vperm.slane %v594, %v910
        %v916 = vsel %vm912, %v915, %v914
        %v917 = vperm.slane %v604, %v908
        %v918 = vperm.slane %v614, %v910
        %v919 = vsel %vm912, %v918, %v917
        %v920 = vperm.slane %v624, %v908
        %v921 = vperm.slane %v634, %v910
        %v922 = vsel %vm912, %v921, %v920
        %v923 = vperm.slane %v644, %v908
        %v924 = vperm.slane %v654, %v910
        %v925 = vsel %vm912, %v924, %v923
        %v926 = vperm.slane %v664, %v908
        %v927 = vperm.slane %v674, %v910
        %v928 = vsel %vm912, %v927, %v926
        %v929 = vperm.slane %v684, %v908
        %v930 = vperm.slane %v694, %v910
        %v931 = vsel %vm912, %v930, %v929
        %v932 = vperm.slane %v704, %v908
        %v933 = vperm.slane %v714, %v910
        %v934 = vsel %vm912, %v933, %v932
        %v935 = vperm.slane %v724, %v908
        %v936 = vperm.slane %v734, %v910
        %v937 = vsel %vm912, %v936, %v935
        %v938 = vperm.slane %v744, %v908
        %v939 = vperm.slane %v754, %v910
        %v940 = vsel %vm912, %v939, %v938
        %v941 = vperm.slane %v764, %v908
        %v942 = vperm.slane %v774, %v910
        %v943 = vsel %vm912, %v942, %v941
        %v944 = vperm.slane %v784, %v908
        %v945 = vperm.slane %v794, %v910
        %v946 = vsel %vm912, %v945, %v944
        %v947 = vperm.slane %v804, %v908
        %v948 = vperm.slane %v814, %v910
        %v949 = vsel %vm912, %v948, %v947
        %v950 = vperm.slane %v824, %v908
        %v951 = vperm.slane %v834, %v910
        %v952 = vsel %vm912, %v951, %v950
        %v953 = vperm.slane %v844, %v908
        %v954 = vperm.slane %v854, %v910
        %v955 = vsel %vm912, %v954, %v953
        %v956 = vperm.slane %v864, %v908
        %v957 = vperm.slane %v874, %v910
        %v958 = vsel %vm912, %v957, %v956
        %vm959 = vcmask 1041409
        %v960 = vsel %vm959, %v916, %v913
        %vm961 = vcmask 1042434
        %v962 = vsel %vm961, %v919, %v960
        %vm963 = vcmask 1043459
        %v964 = vsel %vm963, %v922, %v962
        %vm965 = vcmask 1044484
        %v966 = vsel %vm965, %v925, %v964
        %vm967 = vcmask 1045509
        %v968 = vsel %vm967, %v928, %v966
        %vm969 = vcmask 1046534
        %v970 = vsel %vm969, %v931, %v968
        %vm971 = vcmask 1047559
        %v972 = vsel %vm971, %v934, %v970
        %v973 = vsel %vm959, %v940, %v937
        %v974 = vsel %vm961, %v943, %v973
        %v975 = vsel %vm963, %v946, %v974
        %v976 = vsel %vm965, %v949, %v975
        %v977 = vsel %vm967, %v952, %v976
        %v978 = vsel %vm969, %v955, %v977
        %v979 = vsel %vm971, %v958, %v978
        %vm982 = vcmask 130048
        %v983 = vsel %vm982, %v972, -inf
        %984 = vmax.xlane.f32.xlu0 %v983
        %v985 = vpop.xlane.xlu0 %984
        %v986 = vsel %vm982, %v979, -inf
        %987 = vmax.xlane.f32.xlu0 %v986
        %v988 = vpop.xlane.xlu0 %987
        %v991 = vperm.slane %v985, 0
        %v992 = vperm.slane %v985, 1
        %v993 = vperm.slane %v985, 2
        %v994 = vperm.slane %v985, 3
        %v995 = vperm.slane %v985, 4
        %v996 = vperm.slane %v985, 5
        %v997 = vperm.slane %v985, 6
        %v998 = vperm.slane %v985, 7
        %v999 = vperm.slane %v988, 0
        %v1000 = vperm.slane %v988, 1
        %v1001 = vperm.slane %v988, 2
        %v1002 = vperm.slane %v988, 3
        %v1003 = vperm.slane %v988, 4
        %v1004 = vperm.slane %v988, 5
        %v1005 = vperm.slane %v988, 6
        %v1006 = vperm.slane %v988, 7
        %v1023 = vsub.f32 %v564, %v991
        %v1024 = vsub.f32 %v574, %v991
        %v1025 = vsub.f32 %v584, %v992
        %v1026 = vsub.f32 %v594, %v992
        %v1027 = vsub.f32 %v604, %v993
        %v1028 = vsub.f32 %v614, %v993
        %v1029 = vsub.f32 %v624, %v994
        %v1030 = vsub.f32 %v634, %v994
        %v1031 = vsub.f32 %v644, %v995
        %v1032 = vsub.f32 %v654, %v995
        %v1033 = vsub.f32 %v664, %v996
        %v1034 = vsub.f32 %v674, %v996
        %v1035 = vsub.f32 %v684, %v997
        %v1036 = vsub.f32 %v694, %v997
        %v1037 = vsub.f32 %v704, %v998
        %v1038 = vsub.f32 %v714, %v998
        %v1039 = vsub.f32 %v724, %v999
        %v1040 = vsub.f32 %v734, %v999
        %v1041 = vsub.f32 %v744, %v1000
        %v1042 = vsub.f32 %v754, %v1000
        %v1043 = vsub.f32 %v764, %v1001
        %v1044 = vsub.f32 %v774, %v1001
        %v1045 = vsub.f32 %v784, %v1002
        %v1046 = vsub.f32 %v794, %v1002
        %v1047 = vsub.f32 %v804, %v1003
        %v1048 = vsub.f32 %v814, %v1003
        %v1049 = vsub.f32 %v824, %v1004
        %v1050 = vsub.f32 %v834, %v1004
        %v1051 = vsub.f32 %v844, %v1005
        %v1052 = vsub.f32 %v854, %v1005
        %v1053 = vsub.f32 %v864, %v1006
        %v1054 = vsub.f32 %v874, %v1006
        %v1055 = vmul.f32 %v1023, 1.442695
        %v1056 = vpow.pop %v1055
        %v1057 = vmul.f32 %v1024, 1.442695
        %v1058 = vpow.pop %v1057
        %v1059 = vmul.f32 %v1025, 1.442695
        %v1060 = vpow.pop %v1059
        %v1061 = vmul.f32 %v1026, 1.442695
        %v1062 = vpow.pop %v1061
        %v1063 = vmul.f32 %v1027, 1.442695
        %v1064 = vpow.pop %v1063
        %v1065 = vmul.f32 %v1028, 1.442695
        %v1066 = vpow.pop %v1065
        %v1067 = vmul.f32 %v1029, 1.442695
        %v1068 = vpow.pop %v1067
        %v1069 = vmul.f32 %v1030, 1.442695
        %v1070 = vpow.pop %v1069
        %v1071 = vmul.f32 %v1031, 1.442695
        %v1072 = vpow.pop %v1071
        %v1073 = vmul.f32 %v1032, 1.442695
        %v1074 = vpow.pop %v1073
        %v1075 = vmul.f32 %v1033, 1.442695
        %v1076 = vpow.pop %v1075
        %v1077 = vmul.f32 %v1034, 1.442695
        %v1078 = vpow.pop %v1077
        %v1079 = vmul.f32 %v1035, 1.442695
        %v1080 = vpow.pop %v1079
        %v1081 = vmul.f32 %v1036, 1.442695
        %v1082 = vpow.pop %v1081
        %v1083 = vmul.f32 %v1037, 1.442695
        %v1084 = vpow.pop %v1083
        %v1085 = vmul.f32 %v1038, 1.442695
        %v1086 = vpow.pop %v1085
        %v1087 = vmul.f32 %v1039, 1.442695
        %v1088 = vpow.pop %v1087
        %v1089 = vmul.f32 %v1040, 1.442695
        %v1090 = vpow.pop %v1089
        %v1091 = vmul.f32 %v1041, 1.442695
        %v1092 = vpow.pop %v1091
        %v1093 = vmul.f32 %v1042, 1.442695
        %v1094 = vpow.pop %v1093
        %v1095 = vmul.f32 %v1043, 1.442695
        %v1096 = vpow.pop %v1095
        %v1097 = vmul.f32 %v1044, 1.442695
        %v1098 = vpow.pop %v1097
        %v1099 = vmul.f32 %v1045, 1.442695
        %v1100 = vpow.pop %v1099
        %v1101 = vmul.f32 %v1046, 1.442695
        %v1102 = vpow.pop %v1101
        %v1103 = vmul.f32 %v1047, 1.442695
        %v1104 = vpow.pop %v1103
        %v1105 = vmul.f32 %v1048, 1.442695
        %v1106 = vpow.pop %v1105
        %v1107 = vmul.f32 %v1049, 1.442695
        %v1108 = vpow.pop %v1107
        %v1109 = vmul.f32 %v1050, 1.442695
        %v1110 = vpow.pop %v1109
        %v1111 = vmul.f32 %v1051, 1.442695
        %v1112 = vpow.pop %v1111
        %v1113 = vmul.f32 %v1052, 1.442695
        %v1114 = vpow.pop %v1113
        %v1115 = vmul.f32 %v1053, 1.442695
        %v1116 = vpow.pop %v1115
        %v1117 = vmul.f32 %v1054, 1.442695
        %v1118 = vpow.pop %v1117
        %1151 = vset.pattern.permute.xlu0 0
        %1152 = vperm.xlu0 %1151, %v1056
        %v1153 = vpop.permute.xlu0 %1152
        %1154 = vset.pattern.permute.xlu0 0
        %1155 = vperm.xlu0 %1154, %v1058
        %v1156 = vpop.permute.xlu0 %1155
        %1157 = vset.pattern.permute.xlu0 0
        %1158 = vperm.xlu0 %1157, %v1060
        %v1159 = vpop.permute.xlu0 %1158
        %1160 = vset.pattern.permute.xlu0 0
        %1161 = vperm.xlu0 %1160, %v1062
        %v1162 = vpop.permute.xlu0 %1161
        %1163 = vset.pattern.permute.xlu0 0
        %1164 = vperm.xlu0 %1163, %v1064
        %v1165 = vpop.permute.xlu0 %1164
        %1166 = vset.pattern.permute.xlu0 0
        %1167 = vperm.xlu0 %1166, %v1066
        %v1168 = vpop.permute.xlu0 %1167
        %1169 = vset.pattern.permute.xlu0 0
        %1170 = vperm.xlu0 %1169, %v1068
        %v1171 = vpop.permute.xlu0 %1170
        %1172 = vset.pattern.permute.xlu0 0
        %1173 = vperm.xlu0 %1172, %v1070
        %v1174 = vpop.permute.xlu0 %1173
        %1175 = vset.pattern.permute.xlu0 0
        %1176 = vperm.xlu0 %1175, %v1072
        %v1177 = vpop.permute.xlu0 %1176
        %1178 = vset.pattern.permute.xlu0 0
        %1179 = vperm.xlu0 %1178, %v1074
        %v1180 = vpop.permute.xlu0 %1179
        %1181 = vset.pattern.permute.xlu0 0
        %1182 = vperm.xlu0 %1181, %v1076
        %v1183 = vpop.permute.xlu0 %1182
        %1184 = vset.pattern.permute.xlu0 0
        %1185 = vperm.xlu0 %1184, %v1078
        %v1186 = vpop.permute.xlu0 %1185
        %1187 = vset.pattern.permute.xlu0 0
        %1188 = vperm.xlu0 %1187, %v1080
        %v1189 = vpop.permute.xlu0 %1188
        %1190 = vset.pattern.permute.xlu0 0
        %1191 = vperm.xlu0 %1190, %v1082
        %v1192 = vpop.permute.xlu0 %1191
        %1193 = vset.pattern.permute.xlu0 0
        %1194 = vperm.xlu0 %1193, %v1084
        %v1195 = vpop.permute.xlu0 %1194
        %1196 = vset.pattern.permute.xlu0 0
        %1197 = vperm.xlu0 %1196, %v1086
        %v1198 = vpop.permute.xlu0 %1197
        %1199 = vset.pattern.permute.xlu0 0
        %1200 = vperm.xlu0 %1199, %v1088
        %v1201 = vpop.permute.xlu0 %1200
        %1202 = vset.pattern.permute.xlu0 0
        %1203 = vperm.xlu0 %1202, %v1090
        %v1204 = vpop.permute.xlu0 %1203
        %1205 = vset.pattern.permute.xlu0 0
        %1206 = vperm.xlu0 %1205, %v1092
        %v1207 = vpop.permute.xlu0 %1206
        %1208 = vset.pattern.permute.xlu0 0
        %1209 = vperm.xlu0 %1208, %v1094
        %v1210 = vpop.permute.xlu0 %1209
        %1211 = vset.pattern.permute.xlu0 0
        %1212 = vperm.xlu0 %1211, %v1096
        %v1213 = vpop.permute.xlu0 %1212
        %1214 = vset.pattern.permute.xlu0 0
        %1215 = vperm.xlu0 %1214, %v1098
        %v1216 = vpop.permute.xlu0 %1215
        %1217 = vset.pattern.permute.xlu0 0
        %1218 = vperm.xlu0 %1217, %v1100
        %v1219 = vpop.permute.xlu0 %1218
        %1220 = vset.pattern.permute.xlu0 0
        %1221 = vperm.xlu0 %1220, %v1102
        %v1222 = vpop.permute.xlu0 %1221
        %1223 = vset.pattern.permute.xlu0 0
        %1224 = vperm.xlu0 %1223, %v1104
        %v1225 = vpop.permute.xlu0 %1224
        %1226 = vset.pattern.permute.xlu0 0
        %1227 = vperm.xlu0 %1226, %v1106
        %v1228 = vpop.permute.xlu0 %1227
        %1229 = vset.pattern.permute.xlu0 0
        %1230 = vperm.xlu0 %1229, %v1108
        %v1231 = vpop.permute.xlu0 %1230
        %1232 = vset.pattern.permute.xlu0 0
        %1233 = vperm.xlu0 %1232, %v1110
        %v1234 = vpop.permute.xlu0 %1233
        %1235 = vset.pattern.permute.xlu0 0
        %1236 = vperm.xlu0 %1235, %v1112
        %v1237 = vpop.permute.xlu0 %1236
        %1238 = vset.pattern.permute.xlu0 0
        %1239 = vperm.xlu0 %1238, %v1114
        %v1240 = vpop.permute.xlu0 %1239
        %1241 = vset.pattern.permute.xlu0 0
        %1242 = vperm.xlu0 %1241, %v1116
        %v1243 = vpop.permute.xlu0 %1242
        %1244 = vset.pattern.permute.xlu0 0
        %1245 = vperm.xlu0 %1244, %v1118
        %v1246 = vpop.permute.xlu0 %1245
        %v1247 = vperm.slane %v1153, %v908
        %v1248 = vperm.slane %v1156, %v910
        %v1249 = vsel %vm912, %v1248, %v1247
        %v1250 = vperm.slane %v1159, %v908
        %v1251 = vperm.slane %v1162, %v910
        %v1252 = vsel %vm912, %v1251, %v1250
        %v1253 = vperm.slane %v1165, %v908
        %v1254 = vperm.slane %v1168, %v910
        %v1255 = vsel %vm912, %v1254, %v1253
        %v1256 = vperm.slane %v1171, %v908
        %v1257 = vperm.slane %v1174, %v910
        %v1258 = vsel %vm912, %v1257, %v1256
        %v1259 = vperm.slane %v1177, %v908
        %v1260 = vperm.slane %v1180, %v910
        %v1261 = vsel %vm912, %v1260, %v1259
        %v1262 = vperm.slane %v1183, %v908
        %v1263 = vperm.slane %v1186, %v910
        %v1264 = vsel %vm912, %v1263, %v1262
        %v1265 = vperm.slane %v1189, %v908
        %v1266 = vperm.slane %v1192, %v910
        %v1267 = vsel %vm912, %v1266, %v1265
        %v1268 = vperm.slane %v1195, %v908
        %v1269 = vperm.slane %v1198, %v910
        %v1270 = vsel %vm912, %v1269, %v1268
        %v1271 = vperm.slane %v1201, %v908
        %v1272 = vperm.slane %v1204, %v910
        %v1273 = vsel %vm912, %v1272, %v1271
        %v1274 = vperm.slane %v1207, %v908
        %v1275 = vperm.slane %v1210, %v910
        %v1276 = vsel %vm912, %v1275, %v1274
        %v1277 = vperm.slane %v1213, %v908
        %v1278 = vperm.slane %v1216, %v910
        %v1279 = vsel %vm912, %v1278, %v1277
        %v1280 = vperm.slane %v1219, %v908
        %v1281 = vperm.slane %v1222, %v910
        %v1282 = vsel %vm912, %v1281, %v1280
        %v1283 = vperm.slane %v1225, %v908
        %v1284 = vperm.slane %v1228, %v910
        %v1285 = vsel %vm912, %v1284, %v1283
        %v1286 = vperm.slane %v1231, %v908
        %v1287 = vperm.slane %v1234, %v910
        %v1288 = vsel %vm912, %v1287, %v1286
        %v1289 = vperm.slane %v1237, %v908
        %v1290 = vperm.slane %v1240, %v910
        %v1291 = vsel %vm912, %v1290, %v1289
        %v1292 = vperm.slane %v1243, %v908
        %v1293 = vperm.slane %v1246, %v910
        %v1294 = vsel %vm912, %v1293, %v1292
        %v1295 = vsel %vm959, %v1252, %v1249
        %v1296 = vsel %vm961, %v1255, %v1295
        %v1297 = vsel %vm963, %v1258, %v1296
        %v1298 = vsel %vm965, %v1261, %v1297
        %v1299 = vsel %vm967, %v1264, %v1298
        %v1300 = vsel %vm969, %v1267, %v1299
        %v1301 = vsel %vm971, %v1270, %v1300
        %v1302 = vsel %vm959, %v1276, %v1273
        %v1303 = vsel %vm961, %v1279, %v1302
        %v1304 = vsel %vm963, %v1282, %v1303
        %v1305 = vsel %vm965, %v1285, %v1304
        %v1306 = vsel %vm967, %v1288, %v1305
        %v1307 = vsel %vm969, %v1291, %v1306
        %v1308 = vsel %vm971, %v1294, %v1307
        %v1311 = vsel %vm982, %v1301, 0.0
        %1312 = vadd.xlane.f32.xlu0 %v1311
        %v1313 = vpop.xlane.xlu0 %1312
        %v1314 = vsel %vm982, %v1308, 0.0
        %1315 = vadd.xlane.f32.xlu0 %v1314
        %v1316 = vpop.xlane.xlu0 %1315
        %v1317 = vrcp.pop %v1313
        %v1318 = vrcp.pop %v1316
        %v1321 = vperm.slane %v1317, 0
        %v1322 = vperm.slane %v1317, 1
        %v1323 = vperm.slane %v1317, 2
        %v1324 = vperm.slane %v1317, 3
        %v1325 = vperm.slane %v1317, 4
        %v1326 = vperm.slane %v1317, 5
        %v1327 = vperm.slane %v1317, 6
        %v1328 = vperm.slane %v1317, 7
        %v1329 = vperm.slane %v1318, 0
        %v1330 = vperm.slane %v1318, 1
        %v1331 = vperm.slane %v1318, 2
        %v1332 = vperm.slane %v1318, 3
        %v1333 = vperm.slane %v1318, 4
        %v1334 = vperm.slane %v1318, 5
        %v1335 = vperm.slane %v1318, 6
        %v1336 = vperm.slane %v1318, 7
        %v1353 = vmul.f32 %v1056, %v1321
        %v1354 = vmul.f32 %v1058, %v1321
        %v1355 = vmul.f32 %v1060, %v1322
        %v1356 = vmul.f32 %v1062, %v1322
        %v1357 = vmul.f32 %v1064, %v1323
        %v1358 = vmul.f32 %v1066, %v1323
        %v1359 = vmul.f32 %v1068, %v1324
        %v1360 = vmul.f32 %v1070, %v1324
        %v1361 = vmul.f32 %v1072, %v1325
        %v1362 = vmul.f32 %v1074, %v1325
        %v1363 = vmul.f32 %v1076, %v1326
        %v1364 = vmul.f32 %v1078, %v1326
        %v1365 = vmul.f32 %v1080, %v1327
        %v1366 = vmul.f32 %v1082, %v1327
        %v1367 = vmul.f32 %v1084, %v1328
        %v1368 = vmul.f32 %v1086, %v1328
        %v1369 = vmul.f32 %v1088, %v1329
        %v1370 = vmul.f32 %v1090, %v1329
        %v1371 = vmul.f32 %v1092, %v1330
        %v1372 = vmul.f32 %v1094, %v1330
        %v1373 = vmul.f32 %v1096, %v1331
        %v1374 = vmul.f32 %v1098, %v1331
        %v1375 = vmul.f32 %v1100, %v1332
        %v1376 = vmul.f32 %v1102, %v1332
        %v1377 = vmul.f32 %v1104, %v1333
        %v1378 = vmul.f32 %v1106, %v1333
        %v1379 = vmul.f32 %v1108, %v1334
        %v1380 = vmul.f32 %v1110, %v1334
        %v1381 = vmul.f32 %v1112, %v1335
        %v1382 = vmul.f32 %v1114, %v1335
        %v1383 = vmul.f32 %v1116, %v1336
        %v1384 = vmul.f32 %v1118, %v1336
        %v1385 = vmul.f32 %v1353, %v1353
        %v1386 = vmul.f32 %v1354, %v1354
        %v1387 = vmul.f32 %v1355, %v1355
        %v1388 = vmul.f32 %v1356, %v1356
        %v1389 = vmul.f32 %v1357, %v1357
        %v1390 = vmul.f32 %v1358, %v1358
        %v1391 = vmul.f32 %v1359, %v1359
        %v1392 = vmul.f32 %v1360, %v1360
        %v1393 = vmul.f32 %v1361, %v1361
        %v1394 = vmul.f32 %v1362, %v1362
        %v1395 = vmul.f32 %v1363, %v1363
        %v1396 = vmul.f32 %v1364, %v1364
        %v1397 = vmul.f32 %v1365, %v1365
        %v1398 = vmul.f32 %v1366, %v1366
        %v1399 = vmul.f32 %v1367, %v1367
        %v1400 = vmul.f32 %v1368, %v1368
        %v1401 = vmul.f32 %v1369, %v1369
        %v1402 = vmul.f32 %v1370, %v1370
        %v1403 = vmul.f32 %v1371, %v1371
        %v1404 = vmul.f32 %v1372, %v1372
        %v1405 = vmul.f32 %v1373, %v1373
        %v1406 = vmul.f32 %v1374, %v1374
        %v1407 = vmul.f32 %v1375, %v1375
        %v1408 = vmul.f32 %v1376, %v1376
        %v1409 = vmul.f32 %v1377, %v1377
        %v1410 = vmul.f32 %v1378, %v1378
        %v1411 = vmul.f32 %v1379, %v1379
        %v1412 = vmul.f32 %v1380, %v1380
        %v1413 = vmul.f32 %v1381, %v1381
        %v1414 = vmul.f32 %v1382, %v1382
        %v1415 = vmul.f32 %v1383, %v1383
        %v1416 = vmul.f32 %v1384, %v1384
        %v1417 = vmul.f32 %v1385, %v300
        %v1418 = vmul.f32 %v1386, %v302
        %v1419 = vmul.f32 %v1387, %v304
        %v1420 = vmul.f32 %v1388, %v306
        %v1421 = vmul.f32 %v1389, %v308
        %v1422 = vmul.f32 %v1390, %v310
        %v1423 = vmul.f32 %v1391, %v312
        %v1424 = vmul.f32 %v1392, %v314
        %v1425 = vmul.f32 %v1393, %v316
        %v1426 = vmul.f32 %v1394, %v318
        %v1427 = vmul.f32 %v1395, %v320
        %v1428 = vmul.f32 %v1396, %v322
        %v1429 = vmul.f32 %v1397, %v324
        %v1430 = vmul.f32 %v1398, %v326
        %v1431 = vmul.f32 %v1399, %v328
        %v1432 = vmul.f32 %v1400, %v330
        %v1433 = vmul.f32 %v1401, %v332
        %v1434 = vmul.f32 %v1402, %v334
        %v1435 = vmul.f32 %v1403, %v336
        %v1436 = vmul.f32 %v1404, %v338
        %v1437 = vmul.f32 %v1405, %v340
        %v1438 = vmul.f32 %v1406, %v342
        %v1439 = vmul.f32 %v1407, %v344
        %v1440 = vmul.f32 %v1408, %v346
        %v1441 = vmul.f32 %v1409, %v348
        %v1442 = vmul.f32 %v1410, %v350
        %v1443 = vmul.f32 %v1411, %v352
        %v1444 = vmul.f32 %v1412, %v354
        %v1445 = vmul.f32 %v1413, %v356
        %v1446 = vmul.f32 %v1414, %v358
        %v1447 = vmul.f32 %v1415, %v360
        %v1448 = vmul.f32 %v1416, %v362
        %v1449 = vmax.f32 %v1417, 1e-24
        %v1450 = vmax.f32 %v1418, 1e-24
        %v1451 = vmax.f32 %v1419, 1e-24
        %v1452 = vmax.f32 %v1420, 1e-24
        %v1453 = vmax.f32 %v1421, 1e-24
        %v1454 = vmax.f32 %v1422, 1e-24
        %v1455 = vmax.f32 %v1423, 1e-24
        %v1456 = vmax.f32 %v1424, 1e-24
        %v1457 = vmax.f32 %v1425, 1e-24
        %v1458 = vmax.f32 %v1426, 1e-24
        %v1459 = vmax.f32 %v1427, 1e-24
        %v1460 = vmax.f32 %v1428, 1e-24
        %v1461 = vmax.f32 %v1429, 1e-24
        %v1462 = vmax.f32 %v1430, 1e-24
        %v1463 = vmax.f32 %v1431, 1e-24
        %v1464 = vmax.f32 %v1432, 1e-24
        %v1465 = vmax.f32 %v1433, 1e-24
        %v1466 = vmax.f32 %v1434, 1e-24
        %v1467 = vmax.f32 %v1435, 1e-24
        %v1468 = vmax.f32 %v1436, 1e-24
        %v1469 = vmax.f32 %v1437, 1e-24
        %v1470 = vmax.f32 %v1438, 1e-24
        %v1471 = vmax.f32 %v1439, 1e-24
        %v1472 = vmax.f32 %v1440, 1e-24
        %v1473 = vmax.f32 %v1441, 1e-24
        %v1474 = vmax.f32 %v1442, 1e-24
        %v1475 = vmax.f32 %v1443, 1e-24
        %v1476 = vmax.f32 %v1444, 1e-24
        %v1477 = vmax.f32 %v1445, 1e-24
        %v1478 = vmax.f32 %v1446, 1e-24
        %v1479 = vmax.f32 %v1447, 1e-24
        %v1480 = vmax.f32 %v1448, 1e-24
        %v1481 = vrsqrt.pop %v1449
        %v1482 = vmul.f32 %v1481, %v1449
        %v1483 = vmul.f32 %v1482, %v1481
        %v1484 = vmul.f32 0.5, %v1483
        %v1485 = vsub.f32 1.5, %v1484
        %v1486 = vmul.f32 %v1481, %v1485
        %vm1487 = vweird.f32 %v1449
        %vm1488 = vweird.f32 %v1481
        %vm1489 = vmor %vm1487, %vm1488
        %v1490 = vsel %vm1489, %v1481, %v1486
        %v1491 = vrsqrt.pop %v1450
        %v1492 = vmul.f32 %v1491, %v1450
        %v1493 = vmul.f32 %v1492, %v1491
        %v1494 = vmul.f32 0.5, %v1493
        %v1495 = vsub.f32 1.5, %v1494
        %v1496 = vmul.f32 %v1491, %v1495
        %vm1497 = vweird.f32 %v1450
        %vm1498 = vweird.f32 %v1491
        %vm1499 = vmor %vm1497, %vm1498
        %v1500 = vsel %vm1499, %v1491, %v1496
        %v1501 = vrsqrt.pop %v1451
        %v1502 = vmul.f32 %v1501, %v1451
        %v1503 = vmul.f32 %v1502, %v1501
        %v1504 = vmul.f32 0.5, %v1503
        %v1505 = vsub.f32 1.5, %v1504
        %v1506 = vmul.f32 %v1501, %v1505
        %vm1507 = vweird.f32 %v1451
        %vm1508 = vweird.f32 %v1501
        %vm1509 = vmor %vm1507, %vm1508
        %v1510 = vsel %vm1509, %v1501, %v1506
        %v1511 = vrsqrt.pop %v1452
        %v1512 = vmul.f32 %v1511, %v1452
        %v1513 = vmul.f32 %v1512, %v1511
        %v1514 = vmul.f32 0.5, %v1513
        %v1515 = vsub.f32 1.5, %v1514
        %v1516 = vmul.f32 %v1511, %v1515
        %vm1517 = vweird.f32 %v1452
        %vm1518 = vweird.f32 %v1511
        %vm1519 = vmor %vm1517, %vm1518
        %v1520 = vsel %vm1519, %v1511, %v1516
        %v1521 = vrsqrt.pop %v1453
        %v1522 = vmul.f32 %v1521, %v1453
        %v1523 = vmul.f32 %v1522, %v1521
        %v1524 = vmul.f32 0.5, %v1523
        %v1525 = vsub.f32 1.5, %v1524
        %v1526 = vmul.f32 %v1521, %v1525
        %vm1527 = vweird.f32 %v1453
        %vm1528 = vweird.f32 %v1521
        %vm1529 = vmor %vm1527, %vm1528
        %v1530 = vsel %vm1529, %v1521, %v1526
        %v1531 = vrsqrt.pop %v1454
        %v1532 = vmul.f32 %v1531, %v1454
        %v1533 = vmul.f32 %v1532, %v1531
        %v1534 = vmul.f32 0.5, %v1533
        %v1535 = vsub.f32 1.5, %v1534
        %v1536 = vmul.f32 %v1531, %v1535
        %vm1537 = vweird.f32 %v1454
        %vm1538 = vweird.f32 %v1531
        %vm1539 = vmor %vm1537, %vm1538
        %v1540 = vsel %vm1539, %v1531, %v1536
        %v1541 = vrsqrt.pop %v1455
        %v1542 = vmul.f32 %v1541, %v1455
        %v1543 = vmul.f32 %v1542, %v1541
        %v1544 = vmul.f32 0.5, %v1543
        %v1545 = vsub.f32 1.5, %v1544
        %v1546 = vmul.f32 %v1541, %v1545
        %vm1547 = vweird.f32 %v1455
        %vm1548 = vweird.f32 %v1541
        %vm1549 = vmor %vm1547, %vm1548
        %v1550 = vsel %vm1549, %v1541, %v1546
        %v1551 = vrsqrt.pop %v1456
        %v1552 = vmul.f32 %v1551, %v1456
        %v1553 = vmul.f32 %v1552, %v1551
        %v1554 = vmul.f32 0.5, %v1553
        %v1555 = vsub.f32 1.5, %v1554
        %v1556 = vmul.f32 %v1551, %v1555
        %vm1557 = vweird.f32 %v1456
        %vm1558 = vweird.f32 %v1551
        %vm1559 = vmor %vm1557, %vm1558
        %v1560 = vsel %vm1559, %v1551, %v1556
        %v1561 = vrsqrt.pop %v1457
        %v1562 = vmul.f32 %v1561, %v1457
        %v1563 = vmul.f32 %v1562, %v1561
        %v1564 = vmul.f32 0.5, %v1563
        %v1565 = vsub.f32 1.5, %v1564
        %v1566 = vmul.f32 %v1561, %v1565
        %vm1567 = vweird.f32 %v1457
        %vm1568 = vweird.f32 %v1561
        %vm1569 = vmor %vm1567, %vm1568
        %v1570 = vsel %vm1569, %v1561, %v1566
        %v1571 = vrsqrt.pop %v1458
        %v1572 = vmul.f32 %v1571, %v1458
        %v1573 = vmul.f32 %v1572, %v1571
        %v1574 = vmul.f32 0.5, %v1573
        %v1575 = vsub.f32 1.5, %v1574
        %v1576 = vmul.f32 %v1571, %v1575
        %vm1577 = vweird.f32 %v1458
        %vm1578 = vweird.f32 %v1571
        %vm1579 = vmor %vm1577, %vm1578
        %v1580 = vsel %vm1579, %v1571, %v1576
        %v1581 = vrsqrt.pop %v1459
        %v1582 = vmul.f32 %v1581, %v1459
        %v1583 = vmul.f32 %v1582, %v1581
        %v1584 = vmul.f32 0.5, %v1583
        %v1585 = vsub.f32 1.5, %v1584
        %v1586 = vmul.f32 %v1581, %v1585
        %vm1587 = vweird.f32 %v1459
        %vm1588 = vweird.f32 %v1581
        %vm1589 = vmor %vm1587, %vm1588
        %v1590 = vsel %vm1589, %v1581, %v1586
        %v1591 = vrsqrt.pop %v1460
        %v1592 = vmul.f32 %v1591, %v1460
        %v1593 = vmul.f32 %v1592, %v1591
        %v1594 = vmul.f32 0.5, %v1593
        %v1595 = vsub.f32 1.5, %v1594
        %v1596 = vmul.f32 %v1591, %v1595
        %vm1597 = vweird.f32 %v1460
        %vm1598 = vweird.f32 %v1591
        %vm1599 = vmor %vm1597, %vm1598
        %v1600 = vsel %vm1599, %v1591, %v1596
        %v1601 = vrsqrt.pop %v1461
        %v1602 = vmul.f32 %v1601, %v1461
        %v1603 = vmul.f32 %v1602, %v1601
        %v1604 = vmul.f32 0.5, %v1603
        %v1605 = vsub.f32 1.5, %v1604
        %v1606 = vmul.f32 %v1601, %v1605
        %vm1607 = vweird.f32 %v1461
        %vm1608 = vweird.f32 %v1601
        %vm1609 = vmor %vm1607, %vm1608
        %v1610 = vsel %vm1609, %v1601, %v1606
        %v1611 = vrsqrt.pop %v1462
        %v1612 = vmul.f32 %v1611, %v1462
        %v1613 = vmul.f32 %v1612, %v1611
        %v1614 = vmul.f32 0.5, %v1613
        %v1615 = vsub.f32 1.5, %v1614
        %v1616 = vmul.f32 %v1611, %v1615
        %vm1617 = vweird.f32 %v1462
        %vm1618 = vweird.f32 %v1611
        %vm1619 = vmor %vm1617, %vm1618
        %v1620 = vsel %vm1619, %v1611, %v1616
        %v1621 = vrsqrt.pop %v1463
        %v1622 = vmul.f32 %v1621, %v1463
        %v1623 = vmul.f32 %v1622, %v1621
        %v1624 = vmul.f32 0.5, %v1623
        %v1625 = vsub.f32 1.5, %v1624
        %v1626 = vmul.f32 %v1621, %v1625
        %vm1627 = vweird.f32 %v1463
        %vm1628 = vweird.f32 %v1621
        %vm1629 = vmor %vm1627, %vm1628
        %v1630 = vsel %vm1629, %v1621, %v1626
        %v1631 = vrsqrt.pop %v1464
        %v1632 = vmul.f32 %v1631, %v1464
        %v1633 = vmul.f32 %v1632, %v1631
        %v1634 = vmul.f32 0.5, %v1633
        %v1635 = vsub.f32 1.5, %v1634
        %v1636 = vmul.f32 %v1631, %v1635
        %vm1637 = vweird.f32 %v1464
        %vm1638 = vweird.f32 %v1631
        %vm1639 = vmor %vm1637, %vm1638
        %v1640 = vsel %vm1639, %v1631, %v1636
        %v1641 = vrsqrt.pop %v1465
        %v1642 = vmul.f32 %v1641, %v1465
        %v1643 = vmul.f32 %v1642, %v1641
        %v1644 = vmul.f32 0.5, %v1643
        %v1645 = vsub.f32 1.5, %v1644
        %v1646 = vmul.f32 %v1641, %v1645
        %vm1647 = vweird.f32 %v1465
        %vm1648 = vweird.f32 %v1641
        %vm1649 = vmor %vm1647, %vm1648
        %v1650 = vsel %vm1649, %v1641, %v1646
        %v1651 = vrsqrt.pop %v1466
        %v1652 = vmul.f32 %v1651, %v1466
        %v1653 = vmul.f32 %v1652, %v1651
        %v1654 = vmul.f32 0.5, %v1653
        %v1655 = vsub.f32 1.5, %v1654
        %v1656 = vmul.f32 %v1651, %v1655
        %vm1657 = vweird.f32 %v1466
        %vm1658 = vweird.f32 %v1651
        %vm1659 = vmor %vm1657, %vm1658
        %v1660 = vsel %vm1659, %v1651, %v1656
        %v1661 = vrsqrt.pop %v1467
        %v1662 = vmul.f32 %v1661, %v1467
        %v1663 = vmul.f32 %v1662, %v1661
        %v1664 = vmul.f32 0.5, %v1663
        %v1665 = vsub.f32 1.5, %v1664
        %v1666 = vmul.f32 %v1661, %v1665
        %vm1667 = vweird.f32 %v1467
        %vm1668 = vweird.f32 %v1661
        %vm1669 = vmor %vm1667, %vm1668
        %v1670 = vsel %vm1669, %v1661, %v1666
        %v1671 = vrsqrt.pop %v1468
        %v1672 = vmul.f32 %v1671, %v1468
        %v1673 = vmul.f32 %v1672, %v1671
        %v1674 = vmul.f32 0.5, %v1673
        %v1675 = vsub.f32 1.5, %v1674
        %v1676 = vmul.f32 %v1671, %v1675
        %vm1677 = vweird.f32 %v1468
        %vm1678 = vweird.f32 %v1671
        %vm1679 = vmor %vm1677, %vm1678
        %v1680 = vsel %vm1679, %v1671, %v1676
        %v1681 = vrsqrt.pop %v1469
        %v1682 = vmul.f32 %v1681, %v1469
        %v1683 = vmul.f32 %v1682, %v1681
        %v1684 = vmul.f32 0.5, %v1683
        %v1685 = vsub.f32 1.5, %v1684
        %v1686 = vmul.f32 %v1681, %v1685
        %vm1687 = vweird.f32 %v1469
        %vm1688 = vweird.f32 %v1681
        %vm1689 = vmor %vm1687, %vm1688
        %v1690 = vsel %vm1689, %v1681, %v1686
        %v1691 = vrsqrt.pop %v1470
        %v1692 = vmul.f32 %v1691, %v1470
        %v1693 = vmul.f32 %v1692, %v1691
        %v1694 = vmul.f32 0.5, %v1693
        %v1695 = vsub.f32 1.5, %v1694
        %v1696 = vmul.f32 %v1691, %v1695
        %vm1697 = vweird.f32 %v1470
        %vm1698 = vweird.f32 %v1691
        %vm1699 = vmor %vm1697, %vm1698
        %v1700 = vsel %vm1699, %v1691, %v1696
        %v1701 = vrsqrt.pop %v1471
        %v1702 = vmul.f32 %v1701, %v1471
        %v1703 = vmul.f32 %v1702, %v1701
        %v1704 = vmul.f32 0.5, %v1703
        %v1705 = vsub.f32 1.5, %v1704
        %v1706 = vmul.f32 %v1701, %v1705
        %vm1707 = vweird.f32 %v1471
        %vm1708 = vweird.f32 %v1701
        %vm1709 = vmor %vm1707, %vm1708
        %v1710 = vsel %vm1709, %v1701, %v1706
        %v1711 = vrsqrt.pop %v1472
        %v1712 = vmul.f32 %v1711, %v1472
        %v1713 = vmul.f32 %v1712, %v1711
        %v1714 = vmul.f32 0.5, %v1713
        %v1715 = vsub.f32 1.5, %v1714
        %v1716 = vmul.f32 %v1711, %v1715
        %vm1717 = vweird.f32 %v1472
        %vm1718 = vweird.f32 %v1711
        %vm1719 = vmor %vm1717, %vm1718
        %v1720 = vsel %vm1719, %v1711, %v1716
        %v1721 = vrsqrt.pop %v1473
        %v1722 = vmul.f32 %v1721, %v1473
        %v1723 = vmul.f32 %v1722, %v1721
        %v1724 = vmul.f32 0.5, %v1723
        %v1725 = vsub.f32 1.5, %v1724
        %v1726 = vmul.f32 %v1721, %v1725
        %vm1727 = vweird.f32 %v1473
        %vm1728 = vweird.f32 %v1721
        %vm1729 = vmor %vm1727, %vm1728
        %v1730 = vsel %vm1729, %v1721, %v1726
        %v1731 = vrsqrt.pop %v1474
        %v1732 = vmul.f32 %v1731, %v1474
        %v1733 = vmul.f32 %v1732, %v1731
        %v1734 = vmul.f32 0.5, %v1733
        %v1735 = vsub.f32 1.5, %v1734
        %v1736 = vmul.f32 %v1731, %v1735
        %vm1737 = vweird.f32 %v1474
        %vm1738 = vweird.f32 %v1731
        %vm1739 = vmor %vm1737, %vm1738
        %v1740 = vsel %vm1739, %v1731, %v1736
        %v1741 = vrsqrt.pop %v1475
        %v1742 = vmul.f32 %v1741, %v1475
        %v1743 = vmul.f32 %v1742, %v1741
        %v1744 = vmul.f32 0.5, %v1743
        %v1745 = vsub.f32 1.5, %v1744
        %v1746 = vmul.f32 %v1741, %v1745
        %vm1747 = vweird.f32 %v1475
        %vm1748 = vweird.f32 %v1741
        %vm1749 = vmor %vm1747, %vm1748
        %v1750 = vsel %vm1749, %v1741, %v1746
        %v1751 = vrsqrt.pop %v1476
        %v1752 = vmul.f32 %v1751, %v1476
        %v1753 = vmul.f32 %v1752, %v1751
        %v1754 = vmul.f32 0.5, %v1753
        %v1755 = vsub.f32 1.5, %v1754
        %v1756 = vmul.f32 %v1751, %v1755
        %vm1757 = vweird.f32 %v1476
        %vm1758 = vweird.f32 %v1751
        %vm1759 = vmor %vm1757, %vm1758
        %v1760 = vsel %vm1759, %v1751, %v1756
        %v1761 = vrsqrt.pop %v1477
        %v1762 = vmul.f32 %v1761, %v1477
        %v1763 = vmul.f32 %v1762, %v1761
        %v1764 = vmul.f32 0.5, %v1763
        %v1765 = vsub.f32 1.5, %v1764
        %v1766 = vmul.f32 %v1761, %v1765
        %vm1767 = vweird.f32 %v1477
        %vm1768 = vweird.f32 %v1761
        %vm1769 = vmor %vm1767, %vm1768
        %v1770 = vsel %vm1769, %v1761, %v1766
        %v1771 = vrsqrt.pop %v1478
        %v1772 = vmul.f32 %v1771, %v1478
        %v1773 = vmul.f32 %v1772, %v1771
        %v1774 = vmul.f32 0.5, %v1773
        %v1775 = vsub.f32 1.5, %v1774
        %v1776 = vmul.f32 %v1771, %v1775
        %vm1777 = vweird.f32 %v1478
        %vm1778 = vweird.f32 %v1771
        %vm1779 = vmor %vm1777, %vm1778
        %v1780 = vsel %vm1779, %v1771, %v1776
        %v1781 = vrsqrt.pop %v1479
        %v1782 = vmul.f32 %v1781, %v1479
        %v1783 = vmul.f32 %v1782, %v1781
        %v1784 = vmul.f32 0.5, %v1783
        %v1785 = vsub.f32 1.5, %v1784
        %v1786 = vmul.f32 %v1781, %v1785
        %vm1787 = vweird.f32 %v1479
        %vm1788 = vweird.f32 %v1781
        %vm1789 = vmor %vm1787, %vm1788
        %v1790 = vsel %vm1789, %v1781, %v1786
        %v1791 = vrsqrt.pop %v1480
        %v1792 = vmul.f32 %v1791, %v1480
        %v1793 = vmul.f32 %v1792, %v1791
        %v1794 = vmul.f32 0.5, %v1793
        %v1795 = vsub.f32 1.5, %v1794
        %v1796 = vmul.f32 %v1791, %v1795
        %vm1797 = vweird.f32 %v1480
        %vm1798 = vweird.f32 %v1791
        %vm1799 = vmor %vm1797, %vm1798
        %v1800 = vsel %vm1799, %v1791, %v1796
        %v1801 = vmul.f32 %v1490, %v1490
        %v1802 = vmul.f32 %v1500, %v1500
        %v1803 = vmul.f32 %v1510, %v1510
        %v1804 = vmul.f32 %v1520, %v1520
        %v1805 = vmul.f32 %v1530, %v1530
        %v1806 = vmul.f32 %v1540, %v1540
        %v1807 = vmul.f32 %v1550, %v1550
        %v1808 = vmul.f32 %v1560, %v1560
        %v1809 = vmul.f32 %v1570, %v1570
        %v1810 = vmul.f32 %v1580, %v1580
        %v1811 = vmul.f32 %v1590, %v1590
        %v1812 = vmul.f32 %v1600, %v1600
        %v1813 = vmul.f32 %v1610, %v1610
        %v1814 = vmul.f32 %v1620, %v1620
        %v1815 = vmul.f32 %v1630, %v1630
        %v1816 = vmul.f32 %v1640, %v1640
        %v1817 = vmul.f32 %v1650, %v1650
        %v1818 = vmul.f32 %v1660, %v1660
        %v1819 = vmul.f32 %v1670, %v1670
        %v1820 = vmul.f32 %v1680, %v1680
        %v1821 = vmul.f32 %v1690, %v1690
        %v1822 = vmul.f32 %v1700, %v1700
        %v1823 = vmul.f32 %v1710, %v1710
        %v1824 = vmul.f32 %v1720, %v1720
        %v1825 = vmul.f32 %v1730, %v1730
        %v1826 = vmul.f32 %v1740, %v1740
        %v1827 = vmul.f32 %v1750, %v1750
        %v1828 = vmul.f32 %v1760, %v1760
        %v1829 = vmul.f32 %v1770, %v1770
        %v1830 = vmul.f32 %v1780, %v1780
        %v1831 = vmul.f32 %v1790, %v1790
        %v1832 = vmul.f32 %v1800, %v1800
        %v1833 = vmul.f32 %v1417, %v1801
        %v1834 = vmul.f32 %v1418, %v1802
        %v1835 = vmul.f32 %v1419, %v1803
        %v1836 = vmul.f32 %v1420, %v1804
        %v1837 = vmul.f32 %v1421, %v1805
        %v1838 = vmul.f32 %v1422, %v1806
        %v1839 = vmul.f32 %v1423, %v1807
        %v1840 = vmul.f32 %v1424, %v1808
        %v1841 = vmul.f32 %v1425, %v1809
        %v1842 = vmul.f32 %v1426, %v1810
        %v1843 = vmul.f32 %v1427, %v1811
        %v1844 = vmul.f32 %v1428, %v1812
        %v1845 = vmul.f32 %v1429, %v1813
        %v1846 = vmul.f32 %v1430, %v1814
        %v1847 = vmul.f32 %v1431, %v1815
        %v1848 = vmul.f32 %v1432, %v1816
        %v1849 = vmul.f32 %v1433, %v1817
        %v1850 = vmul.f32 %v1434, %v1818
        %v1851 = vmul.f32 %v1435, %v1819
        %v1852 = vmul.f32 %v1436, %v1820
        %v1853 = vmul.f32 %v1437, %v1821
        %v1854 = vmul.f32 %v1438, %v1822
        %v1855 = vmul.f32 %v1439, %v1823
        %v1856 = vmul.f32 %v1440, %v1824
        %v1857 = vmul.f32 %v1441, %v1825
        %v1858 = vmul.f32 %v1442, %v1826
        %v1859 = vmul.f32 %v1443, %v1827
        %v1860 = vmul.f32 %v1444, %v1828
        %v1861 = vmul.f32 %v1445, %v1829
        %v1862 = vmul.f32 %v1446, %v1830
        %v1863 = vmul.f32 %v1447, %v1831
        %v1864 = vmul.f32 %v1448, %v1832
        %1897 = vset.pattern.permute.xlu0 0
        %1898 = vperm.xlu0 %1897, %v1833
        %v1899 = vpop.permute.xlu0 %1898
        %1900 = vset.pattern.permute.xlu0 0
        %1901 = vperm.xlu0 %1900, %v1834
        %v1902 = vpop.permute.xlu0 %1901
        %1903 = vset.pattern.permute.xlu0 0
        %1904 = vperm.xlu0 %1903, %v1835
        %v1905 = vpop.permute.xlu0 %1904
        %1906 = vset.pattern.permute.xlu0 0
        %1907 = vperm.xlu0 %1906, %v1836
        %v1908 = vpop.permute.xlu0 %1907
        %1909 = vset.pattern.permute.xlu0 0
        %1910 = vperm.xlu0 %1909, %v1837
        %v1911 = vpop.permute.xlu0 %1910
        %1912 = vset.pattern.permute.xlu0 0
        %1913 = vperm.xlu0 %1912, %v1838
        %v1914 = vpop.permute.xlu0 %1913
        %1915 = vset.pattern.permute.xlu0 0
        %1916 = vperm.xlu0 %1915, %v1839
        %v1917 = vpop.permute.xlu0 %1916
        %1918 = vset.pattern.permute.xlu0 0
        %1919 = vperm.xlu0 %1918, %v1840
        %v1920 = vpop.permute.xlu0 %1919
        %1921 = vset.pattern.permute.xlu0 0
        %1922 = vperm.xlu0 %1921, %v1841
        %v1923 = vpop.permute.xlu0 %1922
        %1924 = vset.pattern.permute.xlu0 0
        %1925 = vperm.xlu0 %1924, %v1842
        %v1926 = vpop.permute.xlu0 %1925
        %1927 = vset.pattern.permute.xlu0 0
        %1928 = vperm.xlu0 %1927, %v1843
        %v1929 = vpop.permute.xlu0 %1928
        %1930 = vset.pattern.permute.xlu0 0
        %1931 = vperm.xlu0 %1930, %v1844
        %v1932 = vpop.permute.xlu0 %1931
        %1933 = vset.pattern.permute.xlu0 0
        %1934 = vperm.xlu0 %1933, %v1845
        %v1935 = vpop.permute.xlu0 %1934
        %1936 = vset.pattern.permute.xlu0 0
        %1937 = vperm.xlu0 %1936, %v1846
        %v1938 = vpop.permute.xlu0 %1937
        %1939 = vset.pattern.permute.xlu0 0
        %1940 = vperm.xlu0 %1939, %v1847
        %v1941 = vpop.permute.xlu0 %1940
        %1942 = vset.pattern.permute.xlu0 0
        %1943 = vperm.xlu0 %1942, %v1848
        %v1944 = vpop.permute.xlu0 %1943
        %1945 = vset.pattern.permute.xlu0 0
        %1946 = vperm.xlu0 %1945, %v1849
        %v1947 = vpop.permute.xlu0 %1946
        %1948 = vset.pattern.permute.xlu0 0
        %1949 = vperm.xlu0 %1948, %v1850
        %v1950 = vpop.permute.xlu0 %1949
        %1951 = vset.pattern.permute.xlu0 0
        %1952 = vperm.xlu0 %1951, %v1851
        %v1953 = vpop.permute.xlu0 %1952
        %1954 = vset.pattern.permute.xlu0 0
        %1955 = vperm.xlu0 %1954, %v1852
        %v1956 = vpop.permute.xlu0 %1955
        %1957 = vset.pattern.permute.xlu0 0
        %1958 = vperm.xlu0 %1957, %v1853
        %v1959 = vpop.permute.xlu0 %1958
        %1960 = vset.pattern.permute.xlu0 0
        %1961 = vperm.xlu0 %1960, %v1854
        %v1962 = vpop.permute.xlu0 %1961
        %1963 = vset.pattern.permute.xlu0 0
        %1964 = vperm.xlu0 %1963, %v1855
        %v1965 = vpop.permute.xlu0 %1964
        %1966 = vset.pattern.permute.xlu0 0
        %1967 = vperm.xlu0 %1966, %v1856
        %v1968 = vpop.permute.xlu0 %1967
        %1969 = vset.pattern.permute.xlu0 0
        %1970 = vperm.xlu0 %1969, %v1857
        %v1971 = vpop.permute.xlu0 %1970
        %1972 = vset.pattern.permute.xlu0 0
        %1973 = vperm.xlu0 %1972, %v1858
        %v1974 = vpop.permute.xlu0 %1973
        %1975 = vset.pattern.permute.xlu0 0
        %1976 = vperm.xlu0 %1975, %v1859
        %v1977 = vpop.permute.xlu0 %1976
        %1978 = vset.pattern.permute.xlu0 0
        %1979 = vperm.xlu0 %1978, %v1860
        %v1980 = vpop.permute.xlu0 %1979
        %1981 = vset.pattern.permute.xlu0 0
        %1982 = vperm.xlu0 %1981, %v1861
        %v1983 = vpop.permute.xlu0 %1982
        %1984 = vset.pattern.permute.xlu0 0
        %1985 = vperm.xlu0 %1984, %v1862
        %v1986 = vpop.permute.xlu0 %1985
        %1987 = vset.pattern.permute.xlu0 0
        %1988 = vperm.xlu0 %1987, %v1863
        %v1989 = vpop.permute.xlu0 %1988
        %1990 = vset.pattern.permute.xlu0 0
        %1991 = vperm.xlu0 %1990, %v1864
        %v1992 = vpop.permute.xlu0 %1991
        %v1993 = vperm.slane %v1899, %v908
        %v1994 = vperm.slane %v1902, %v910
        %v1995 = vsel %vm912, %v1994, %v1993
        %v1996 = vperm.slane %v1905, %v908
        %v1997 = vperm.slane %v1908, %v910
        %v1998 = vsel %vm912, %v1997, %v1996
        %v1999 = vperm.slane %v1911, %v908
        %v2000 = vperm.slane %v1914, %v910
        %v2001 = vsel %vm912, %v2000, %v1999
        %v2002 = vperm.slane %v1917, %v908
        %v2003 = vperm.slane %v1920, %v910
        %v2004 = vsel %vm912, %v2003, %v2002
        %v2005 = vperm.slane %v1923, %v908
        %v2006 = vperm.slane %v1926, %v910
        %v2007 = vsel %vm912, %v2006, %v2005
        %v2008 = vperm.slane %v1929, %v908
        %v2009 = vperm.slane %v1932, %v910
        %v2010 = vsel %vm912, %v2009, %v2008
        %v2011 = vperm.slane %v1935, %v908
        %v2012 = vperm.slane %v1938, %v910
        %v2013 = vsel %vm912, %v2012, %v2011
        %v2014 = vperm.slane %v1941, %v908
        %v2015 = vperm.slane %v1944, %v910
        %v2016 = vsel %vm912, %v2015, %v2014
        %v2017 = vperm.slane %v1947, %v908
        %v2018 = vperm.slane %v1950, %v910
        %v2019 = vsel %vm912, %v2018, %v2017
        %v2020 = vperm.slane %v1953, %v908
        %v2021 = vperm.slane %v1956, %v910
        %v2022 = vsel %vm912, %v2021, %v2020
        %v2023 = vperm.slane %v1959, %v908
        %v2024 = vperm.slane %v1962, %v910
        %v2025 = vsel %vm912, %v2024, %v2023
        %v2026 = vperm.slane %v1965, %v908
        %v2027 = vperm.slane %v1968, %v910
        %v2028 = vsel %vm912, %v2027, %v2026
        %v2029 = vperm.slane %v1971, %v908
        %v2030 = vperm.slane %v1974, %v910
        %v2031 = vsel %vm912, %v2030, %v2029
        %v2032 = vperm.slane %v1977, %v908
        %v2033 = vperm.slane %v1980, %v910
        %v2034 = vsel %vm912, %v2033, %v2032
        %v2035 = vperm.slane %v1983, %v908
        %v2036 = vperm.slane %v1986, %v910
        %v2037 = vsel %vm912, %v2036, %v2035
        %v2038 = vperm.slane %v1989, %v908
        %v2039 = vperm.slane %v1992, %v910
        %v2040 = vsel %vm912, %v2039, %v2038
        %v2041 = vsel %vm959, %v1998, %v1995
        %v2042 = vsel %vm961, %v2001, %v2041
        %v2043 = vsel %vm963, %v2004, %v2042
        %v2044 = vsel %vm965, %v2007, %v2043
        %v2045 = vsel %vm967, %v2010, %v2044
        %v2046 = vsel %vm969, %v2013, %v2045
        %v2047 = vsel %vm971, %v2016, %v2046
        %v2048 = vsel %vm959, %v2022, %v2019
        %v2049 = vsel %vm961, %v2025, %v2048
        %v2050 = vsel %vm963, %v2028, %v2049
        %v2051 = vsel %vm965, %v2031, %v2050
        %v2052 = vsel %vm967, %v2034, %v2051
        %v2053 = vsel %vm969, %v2037, %v2052
        %v2054 = vsel %vm971, %v2040, %v2053
        %v2057 = vsel %vm982, %v2047, 0.0
        %2058 = vadd.xlane.f32.xlu0 %v2057
        %v2059 = vpop.xlane.xlu0 %2058
        %v2060 = vsel %vm982, %v2054, 0.0
        %2061 = vadd.xlane.f32.xlu0 %v2060
        %v2062 = vpop.xlane.xlu0 %2061
        %v2063 = vmax.f32 %v2059, 1e-24
        %v2064 = vmax.f32 %v2062, 1e-24
        %v2065 = vrsqrt.pop %v2063
        %v2066 = vmul.f32 %v2065, %v2063
        %v2067 = vmul.f32 %v2066, %v2065
        %v2068 = vmul.f32 0.5, %v2067
        %v2069 = vsub.f32 1.5, %v2068
        %v2070 = vmul.f32 %v2065, %v2069
        %vm2071 = vweird.f32 %v2063
        %vm2072 = vweird.f32 %v2065
        %vm2073 = vmor %vm2071, %vm2072
        %v2074 = vsel %vm2073, %v2065, %v2070
        %v2075 = vrsqrt.pop %v2064
        %v2076 = vmul.f32 %v2075, %v2064
        %v2077 = vmul.f32 %v2076, %v2075
        %v2078 = vmul.f32 0.5, %v2077
        %v2079 = vsub.f32 1.5, %v2078
        %v2080 = vmul.f32 %v2075, %v2079
        %vm2081 = vweird.f32 %v2064
        %vm2082 = vweird.f32 %v2075
        %vm2083 = vmor %vm2081, %vm2082
        %v2084 = vsel %vm2083, %v2075, %v2080
        %v2085 = vmul.f32 %v1353, %v1490
        %v2086 = vmul.f32 %v1354, %v1500
        %v2087 = vmul.f32 %v1355, %v1510
        %v2088 = vmul.f32 %v1356, %v1520
        %v2089 = vmul.f32 %v1357, %v1530
        %v2090 = vmul.f32 %v1358, %v1540
        %v2091 = vmul.f32 %v1359, %v1550
        %v2092 = vmul.f32 %v1360, %v1560
        %v2093 = vmul.f32 %v1361, %v1570
        %v2094 = vmul.f32 %v1362, %v1580
        %v2095 = vmul.f32 %v1363, %v1590
        %v2096 = vmul.f32 %v1364, %v1600
        %v2097 = vmul.f32 %v1365, %v1610
        %v2098 = vmul.f32 %v1366, %v1620
        %v2099 = vmul.f32 %v1367, %v1630
        %v2100 = vmul.f32 %v1368, %v1640
        %v2101 = vmul.f32 %v1369, %v1650
        %v2102 = vmul.f32 %v1370, %v1660
        %v2103 = vmul.f32 %v1371, %v1670
        %v2104 = vmul.f32 %v1372, %v1680
        %v2105 = vmul.f32 %v1373, %v1690
        %v2106 = vmul.f32 %v1374, %v1700
        %v2107 = vmul.f32 %v1375, %v1710
        %v2108 = vmul.f32 %v1376, %v1720
        %v2109 = vmul.f32 %v1377, %v1730
        %v2110 = vmul.f32 %v1378, %v1740
        %v2111 = vmul.f32 %v1379, %v1750
        %v2112 = vmul.f32 %v1380, %v1760
        %v2113 = vmul.f32 %v1381, %v1770
        %v2114 = vmul.f32 %v1382, %v1780
        %v2115 = vmul.f32 %v1383, %v1790
        %v2116 = vmul.f32 %v1384, %v1800
        %v2119 = vperm.slane %v2074, 0
        %v2120 = vperm.slane %v2074, 1
        %v2121 = vperm.slane %v2074, 2
        %v2122 = vperm.slane %v2074, 3
        %v2123 = vperm.slane %v2074, 4
        %v2124 = vperm.slane %v2074, 5
        %v2125 = vperm.slane %v2074, 6
        %v2126 = vperm.slane %v2074, 7
        %v2127 = vperm.slane %v2084, 0
        %v2128 = vperm.slane %v2084, 1
        %v2129 = vperm.slane %v2084, 2
        %v2130 = vperm.slane %v2084, 3
        %v2131 = vperm.slane %v2084, 4
        %v2132 = vperm.slane %v2084, 5
        %v2133 = vperm.slane %v2084, 6
        %v2134 = vperm.slane %v2084, 7
        %v2151 = vmul.f32 %v2085, %v2119
        %v2152 = vmul.f32 %v2086, %v2119
        %v2153 = vmul.f32 %v2087, %v2120
        %v2154 = vmul.f32 %v2088, %v2120
        %v2155 = vmul.f32 %v2089, %v2121
        %v2156 = vmul.f32 %v2090, %v2121
        %v2157 = vmul.f32 %v2091, %v2122
        %v2158 = vmul.f32 %v2092, %v2122
        %v2159 = vmul.f32 %v2093, %v2123
        %v2160 = vmul.f32 %v2094, %v2123
        %v2161 = vmul.f32 %v2095, %v2124
        %v2162 = vmul.f32 %v2096, %v2124
        %v2163 = vmul.f32 %v2097, %v2125
        %v2164 = vmul.f32 %v2098, %v2125
        %v2165 = vmul.f32 %v2099, %v2126
        %v2166 = vmul.f32 %v2100, %v2126
        %v2167 = vmul.f32 %v2101, %v2127
        %v2168 = vmul.f32 %v2102, %v2127
        %v2169 = vmul.f32 %v2103, %v2128
        %v2170 = vmul.f32 %v2104, %v2128
        %v2171 = vmul.f32 %v2105, %v2129
        %v2172 = vmul.f32 %v2106, %v2129
        %v2173 = vmul.f32 %v2107, %v2130
        %v2174 = vmul.f32 %v2108, %v2130
        %v2175 = vmul.f32 %v2109, %v2131
        %v2176 = vmul.f32 %v2110, %v2131
        %v2177 = vmul.f32 %v2111, %v2132
        %v2178 = vmul.f32 %v2112, %v2132
        %v2179 = vmul.f32 %v2113, %v2133
        %v2180 = vmul.f32 %v2114, %v2133
        %v2181 = vmul.f32 %v2115, %v2134
        %v2182 = vmul.f32 %v2116, %v2134
        %2184 = vset.pattern.permute.xlu0 0
        %2185 = vperm.xlu0 %2184, %v2151
        %v2186 = vpop.permute.xlu0 %2185
        %2189 = vset.pattern.permute.xlu0 0
        %2190 = vperm.xlu0 %2189, %v2152
        %v2191 = vpop.permute.xlu0 %2190
        %2194 = vset.pattern.permute.xlu0 0
        %2195 = vperm.xlu0 %2194, %v2153
        %v2196 = vpop.permute.xlu0 %2195
        %2199 = vset.pattern.permute.xlu0 0
        %2200 = vperm.xlu0 %2199, %v2154
        %v2201 = vpop.permute.xlu0 %2200
        %2204 = vset.pattern.permute.xlu0 0
        %2205 = vperm.xlu0 %2204, %v2155
        %v2206 = vpop.permute.xlu0 %2205
        %2209 = vset.pattern.permute.xlu0 0
        %2210 = vperm.xlu0 %2209, %v2156
        %v2211 = vpop.permute.xlu0 %2210
        %2214 = vset.pattern.permute.xlu0 0
        %2215 = vperm.xlu0 %2214, %v2157
        %v2216 = vpop.permute.xlu0 %2215
        %2219 = vset.pattern.permute.xlu0 0
        %2220 = vperm.xlu0 %2219, %v2158
        %v2221 = vpop.permute.xlu0 %2220
        %2224 = vset.pattern.permute.xlu0 0
        %2225 = vperm.xlu0 %2224, %v2159
        %v2226 = vpop.permute.xlu0 %2225
        %2229 = vset.pattern.permute.xlu0 0
        %2230 = vperm.xlu0 %2229, %v2160
        %v2231 = vpop.permute.xlu0 %2230
        %2234 = vset.pattern.permute.xlu0 0
        %2235 = vperm.xlu0 %2234, %v2161
        %v2236 = vpop.permute.xlu0 %2235
        %2239 = vset.pattern.permute.xlu0 0
        %2240 = vperm.xlu0 %2239, %v2162
        %v2241 = vpop.permute.xlu0 %2240
        %2244 = vset.pattern.permute.xlu0 0
        %2245 = vperm.xlu0 %2244, %v2163
        %v2246 = vpop.permute.xlu0 %2245
        %2249 = vset.pattern.permute.xlu0 0
        %2250 = vperm.xlu0 %2249, %v2164
        %v2251 = vpop.permute.xlu0 %2250
        %2254 = vset.pattern.permute.xlu0 0
        %2255 = vperm.xlu0 %2254, %v2165
        %v2256 = vpop.permute.xlu0 %2255
        %2259 = vset.pattern.permute.xlu0 0
        %2260 = vperm.xlu0 %2259, %v2166
        %v2261 = vpop.permute.xlu0 %2260
        %2264 = vset.pattern.permute.xlu0 0
        %2265 = vperm.xlu0 %2264, %v2167
        %v2266 = vpop.permute.xlu0 %2265
        %2269 = vset.pattern.permute.xlu0 0
        %2270 = vperm.xlu0 %2269, %v2168
        %v2271 = vpop.permute.xlu0 %2270
        %2274 = vset.pattern.permute.xlu0 0
        %2275 = vperm.xlu0 %2274, %v2169
        %v2276 = vpop.permute.xlu0 %2275
        %2279 = vset.pattern.permute.xlu0 0
        %2280 = vperm.xlu0 %2279, %v2170
        %v2281 = vpop.permute.xlu0 %2280
        %2284 = vset.pattern.permute.xlu0 0
        %2285 = vperm.xlu0 %2284, %v2171
        %v2286 = vpop.permute.xlu0 %2285
        %2289 = vset.pattern.permute.xlu0 0
        %2290 = vperm.xlu0 %2289, %v2172
        %v2291 = vpop.permute.xlu0 %2290
        %2294 = vset.pattern.permute.xlu0 0
        %2295 = vperm.xlu0 %2294, %v2173
        %v2296 = vpop.permute.xlu0 %2295
        %2299 = vset.pattern.permute.xlu0 0
        %2300 = vperm.xlu0 %2299, %v2174
        %v2301 = vpop.permute.xlu0 %2300
        %2304 = vset.pattern.permute.xlu0 0
        %2305 = vperm.xlu0 %2304, %v2175
        %v2306 = vpop.permute.xlu0 %2305
        %2309 = vset.pattern.permute.xlu0 0
        %2310 = vperm.xlu0 %2309, %v2176
        %v2311 = vpop.permute.xlu0 %2310
        %2314 = vset.pattern.permute.xlu0 0
        %2315 = vperm.xlu0 %2314, %v2177
        %v2316 = vpop.permute.xlu0 %2315
        %2319 = vset.pattern.permute.xlu0 0
        %2320 = vperm.xlu0 %2319, %v2178
        %v2321 = vpop.permute.xlu0 %2320
        %2324 = vset.pattern.permute.xlu0 0
        %2325 = vperm.xlu0 %2324, %v2179
        %v2326 = vpop.permute.xlu0 %2325
        %2329 = vset.pattern.permute.xlu0 0
        %2330 = vperm.xlu0 %2329, %v2180
        %v2331 = vpop.permute.xlu0 %2330
        %2334 = vset.pattern.permute.xlu0 0
        %2335 = vperm.xlu0 %2334, %v2181
        %v2336 = vpop.permute.xlu0 %2335
        %2339 = vset.pattern.permute.xlu0 0
        %2340 = vperm.xlu0 %2339, %v2182
        %v2341 = vpop.permute.xlu0 %2340
        %v2343 = vmul.f32 %v235, %v2186
        %v2344 = vmul.f32 %v236, %v2191
        %v2345 = vmul.f32 %v237, %v2196
        %v2346 = vmul.f32 %v238, %v2201
        %v2347 = vmul.f32 %v239, %v2206
        %v2348 = vmul.f32 %v240, %v2211
        %v2349 = vmul.f32 %v241, %v2216
        %v2350 = vmul.f32 %v242, %v2221
        %v2351 = vmul.f32 %v243, %v2226
        %v2352 = vmul.f32 %v244, %v2231
        %v2353 = vmul.f32 %v245, %v2236
        %v2354 = vmul.f32 %v246, %v2241
        %v2355 = vmul.f32 %v247, %v2246
        %v2356 = vmul.f32 %v248, %v2251
        %v2357 = vmul.f32 %v249, %v2256
        %v2358 = vmul.f32 %v250, %v2261
        %v2359 = vmul.f32 %v251, %v2266
        %v2360 = vmul.f32 %v252, %v2271
        %v2361 = vmul.f32 %v253, %v2276
        %v2362 = vmul.f32 %v254, %v2281
        %v2363 = vmul.f32 %v255, %v2286
        %v2364 = vmul.f32 %v256, %v2291
        %v2365 = vmul.f32 %v257, %v2296
        %v2366 = vmul.f32 %v258, %v2301
        %v2367 = vmul.f32 %v259, %v2306
        %v2368 = vmul.f32 %v260, %v2311
        %v2369 = vmul.f32 %v261, %v2316
        %v2370 = vmul.f32 %v262, %v2321
        %v2371 = vmul.f32 %v263, %v2326
        %v2372 = vmul.f32 %v264, %v2331
        %v2373 = vmul.f32 %v265, %v2336
        %v2374 = vmul.f32 %v266, %v2341
        %2375 = vst [vmem:[%s180] sm:$0xff] %v2343
        %2376 = vst [vmem:[%s180 + $0x8] sm:$0xff] %v2344
        %2377 = vst [vmem:[%s180 + $0x10] sm:$0xff] %v2345
        %2378 = vst [vmem:[%s180 + $0x18] sm:$0xff] %v2346
        %2379 = vst [vmem:[%s180 + $0x20] sm:$0xff] %v2347
        %2380 = vst [vmem:[%s180 + $0x28] sm:$0xff] %v2348
        %2381 = vst [vmem:[%s180 + $0x30] sm:$0xff] %v2349
        %2382 = vst [vmem:[%s180 + $0x38] sm:$0xff] %v2350
        %2383 = vst [vmem:[%s180 + $0x40] sm:$0xff] %v2351
        %2384 = vst [vmem:[%s180 + $0x48] sm:$0xff] %v2352
        %2385 = vst [vmem:[%s180 + $0x50] sm:$0xff] %v2353
        %2386 = vst [vmem:[%s180 + $0x58] sm:$0xff] %v2354
        %2387 = vst [vmem:[%s180 + $0x60] sm:$0xff] %v2355
        %2388 = vst [vmem:[%s180 + $0x68] sm:$0xff] %v2356
        %2389 = vst [vmem:[%s180 + $0x70] sm:$0xff] %v2357
        %2390 = vst [vmem:[%s180 + $0x78] sm:$0xff] %v2358
        %2391 = vst [vmem:[%s180 + $0x80] sm:$0xff] %v2359
        %2392 = vst [vmem:[%s180 + $0x88] sm:$0xff] %v2360
        %2393 = vst [vmem:[%s180 + $0x90] sm:$0xff] %v2361
        %2394 = vst [vmem:[%s180 + $0x98] sm:$0xff] %v2362
        %2395 = vst [vmem:[%s180 + $0xa0] sm:$0xff] %v2363
        %2396 = vst [vmem:[%s180 + $0xa8] sm:$0xff] %v2364
        %2397 = vst [vmem:[%s180 + $0xb0] sm:$0xff] %v2365
        %2398 = vst [vmem:[%s180 + $0xb8] sm:$0xff] %v2366
        %2399 = vst [vmem:[%s180 + $0xc0] sm:$0xff] %v2367
        %2400 = vst [vmem:[%s180 + $0xc8] sm:$0xff] %v2368
        %2401 = vst [vmem:[%s180 + $0xd0] sm:$0xff] %v2369
        %2402 = vst [vmem:[%s180 + $0xd8] sm:$0xff] %v2370
        %2403 = vst [vmem:[%s180 + $0xe0] sm:$0xff] %v2371
        %2404 = vst [vmem:[%s180 + $0xe8] sm:$0xff] %v2372
        %2405 = vst [vmem:[%s180 + $0xf0] sm:$0xff] %v2373
        %2406 = vst [vmem:[%s180 + $0xf8] sm:$0xff] %v2374
        %s2407 = sand.u32 %s75, 1
        %s2408 = scalar_lea.sflag [#allocation4], %s2407
        %s2409 = sand.u32 %s75, 1
        %s2410 = smul.addr %s2409, 256
        %s2411 = scalar_lea.vmem [#allocation7], %s2410
        // Predicated region
        $region37: #{tpu_custom_call.1} parent=27 // pred_check
          %p2412 = pneg %p85
        $region38: #{tpu_custom_call.1} parent=27 // pred_check_branch
          %2414 = sbr.rel (%p2412) target = $region40
        $region39: #{tpu_custom_call.1} parent=27 // pred_region
          %s2415 = smul.u32 16, %s20
          %2417 = vsyncadd %s2408, 0
          %s2418 = smul.addr %s2415, 2
          %s2419 = smul.addr %s2418, 8
          %s2420 = scalar_lea.hbm %s2, %s2419
          %s2421 = sshll.u32 %s2411, 4
          %s2422 = int_to_ptr.vmem [resolvable:$true] %s2421
          %s2423 = sshll.u32 %s2420, 4
          %s2424 = int_to_ptr.hbm [resolvable:$true] %s2423
          %2429 = dma.vmem_to_hbm [thread:$0]  %s2422, 4096, %s2424, %s2408, 128, 128, 8
        $region40: #{tpu_custom_call.1} parent=27 // pred_fallthru
          _
      $region28: #{tpu_custom_call.1} parent=5 // pred_fallthru
        _
      %p2430 = scmp.le.s32.totalorder 2, %s15
      // Predicated region
      $region41: #{tpu_custom_call.1} parent=5 // pred_check
        %p2431 = pneg %p2430
      $region42: #{tpu_custom_call.1} parent=5 // pred_check_branch
        %2433 = sbr.rel (%p2431) target = $region44
      $region43: #{tpu_custom_call.1} parent=5 // pred_region
        %s2434 = ssub.s32 %s15, 2
        // Predicated region
        $region45: #{tpu_custom_call.1} parent=43 // pred_check
          %p2435 = pneg %p91
        $region46: #{tpu_custom_call.1} parent=43 // pred_check_branch
          %2437 = sbr.rel (%p2435) target = $region48
        $region47: #{tpu_custom_call.1} parent=43 // pred_region
          %s2438 = sand.u32 %s76, 1
          %s2439 = scalar_lea.sflag [#allocation4], %s2438
          %s2440 = sand.u32 %s76, 1
          %s2441 = smul.addr %s2440, 256
          %s2442 = scalar_lea.vmem [#allocation7], %s2441
          %2444 = dma.done %s2439, 4096
        $region48: #{tpu_custom_call.1} parent=43 // pred_fallthru
          _
      $region44: #{tpu_custom_call.1} parent=5 // pred_fallthru
        _
    $region6: #{tpu_custom_call.1} parent=1 // loop_footer
      %s19 = sadd.s32 1, %s15
    $region7: #{tpu_custom_call.1} parent=1 // loop_footer_branch
      %14 = sbr.rel target = $region3
    $region8: #{tpu_custom_call.1} parent=1 // loop_exit
      _
    %2445 = vsyncpa [#allocation3], 1
    %s2446 = scalar_lea.sflag [#allocation3], 1
    %2447 = vsyncpa %s2446, 1
    %2448 = vsyncpa [#allocation6], 1
    %2449 = vsyncpa [#allocation4], 1
    %s2450 = scalar_lea.sflag [#allocation4], 1
    %2451 = vsyncpa %s2450, 1

</llo_original>
